<compile_context>
chip_gen: v5e
topology: v5e:2x2
jax: 0.10.0
libtpu: 0.0.40
codegen_flags: <defaults>
</compile_context>

<pallas_src>
import numpy as np
import jax
import jax.numpy as jnp
from jax.experimental import pallas as pl
from jax.experimental.pallas import tpu as pltpu

# Static network dimensions (28x28 input is implied by the 16*7*7 flatten).
H1, W1, CIN, C1 = 28, 28, 1, 6     # conv1: 28x28x1 -> 28x28x6
H2, W2, C2 = 14, 14, 16            # conv2: 14x14x6 -> 14x14x16
HP, WP = 7, 7                      # spatial size after pool2
F1, F2, F3 = 120, 84, 10           # fully-connected sizes


# ------------------------------ fused kernel -------------------------------

def _fused_forward_kernel(x_ref,
                          s1_ref, m1_ref, b1_ref, sw1_ref, sh1_ref,
                          s2_ref, m2_ref, b2_ref, sw2_ref, sh2_ref,
                          wf1_ref, bf1_ref, wf2_ref, bf2_ref,
                          wf3_ref, bf3_ref,
                          o_ref):
    f32 = jnp.float32

    # ---- conv1 + ReLU : (28, 28) -> (28, 28*6) ----------------------------
    x = x_ref[0]                                           # (28, 28)
    acc1 = jnp.zeros((H1, W1 * C1), f32)
    for kh in range(3):
        shifted = jnp.dot(s1_ref[kh], x, preferred_element_type=f32)
        acc1 = acc1 + jnp.dot(shifted, m1_ref[kh], preferred_element_type=f32)
    y1 = jnp.maximum(acc1 + b1_ref[...], 0.0)              # (28, 168)

    # ---- maxpool1 2x2 : (28, 168) -> (14, 84) ------------------------------
    pw1 = jnp.maximum(y1[:, :(W1 - 1) * C1], y1[:, C1:])   # pair-max along W
    q1 = jnp.dot(pw1, sw1_ref[...], preferred_element_type=f32)  # keep even W
    ph1 = jnp.maximum(q1[:H1 - 1, :], q1[1:, :])           # pair-max along H
    p1 = jnp.dot(sh1_ref[...], ph1, preferred_element_type=f32)  # (14, 84)

    # ---- conv2 + ReLU : (14, 84) -> (14, 14*16) ----------------------------
    acc2 = jnp.zeros((H2, W2 * C2), f32)
    for kh in range(3):
        shifted = jnp.dot(s2_ref[kh], p1, preferred_element_type=f32)
        acc2 = acc2 + jnp.dot(shifted, m2_ref[kh], preferred_element_type=f32)
    y2 = jnp.maximum(acc2 + b2_ref[...], 0.0)              # (14, 224)

    # ---- maxpool2 2x2 : (14, 224) -> (7, 112) ------------------------------
    pw2 = jnp.maximum(y2[:, :(W2 - 1) * C2], y2[:, C2:])
    q2 = jnp.dot(pw2, sw2_ref[...], preferred_element_type=f32)
    ph2 = jnp.maximum(q2[:H2 - 1, :], q2[1:, :])
    p2 = jnp.dot(sh2_ref[...], ph2, preferred_element_type=f32)  # (7, 112)

    # ---- fully connected stack (no activations between Linears) ------------
    # fc1 weight is pre-grouped per pooled row h, so no flatten / transpose of
    # the activation is needed:  out = b + sum_h p2[h] @ wf1[h]
    acc = bf1_ref[...]                                     # (1, 120)
    for h in range(HP):
        acc = acc + jnp.dot(p2[h:h + 1, :], wf1_ref[h],
                            preferred_element_type=f32)
    f2 = jnp.dot(acc, wf2_ref[...], preferred_element_type=f32) + bf2_ref[...]
    f3 = jnp.dot(f2, wf3_ref[...], preferred_element_type=f32) + bf3_ref[...]
    o_ref[0] = f3                                          # (1, 10)


# --------------------- one-time host-side weight repack ---------------------

def _hshift_matrices(height):
    """(3, H, H) 0/1 matrices: Skh @ X == X shifted by (kh-1) rows, zero fill."""
    s = np.zeros((3, height, height), np.float32)
    for kh in range(3):
        for h in range(height):
            r = h - 1 + kh
            if 0 <= r < height:
                s[kh, h, r] = 1.0
    return jnp.asarray(s)


def _conv_shift_mix_matrices(w, width):
    """Fold a torch (Cout,Cin,3,3) conv weight into 3 matrices M[kh] of shape
    (width*Cin, width*Cout) so that, with the H-shifted input laid out as
    rows=H, lanes=(w*Cin+ci),   out = sum_kh (Skh @ X) @ M[kh]
    reproduces Conv2d(padding=1) in the lanes=(w*Cout+co) layout."""
    cout, cin, _, _ = w.shape
    wn = np.asarray(w, np.float32)
    m = np.zeros((3, width * cin, width * cout), np.float32)
    for kh in range(3):
        for wo in range(width):
            for kw in range(3):
                wi = wo - 1 + kw
                if 0 <= wi < width:
                    m[kh, wi * cin:(wi + 1) * cin,
                      wo * cout:(wo + 1) * cout] = wn[:, :, kh, kw].T
    return jnp.asarray(m)


def _wpool_select(width, c):
    """((width-1)*c, (width//2)*c) 0/1 matrix selecting even-w lane groups."""
    s = np.zeros(((width - 1) * c, (width // 2) * c), np.float32)
    for wo in range(width // 2):
        for ci in range(c):
            s[2 * wo * c + ci, wo * c + ci] = 1.0
    return jnp.asarray(s)


def _hpool_select(height):
    """(height//2, height-1) 0/1 matrix selecting even rows."""
    s = np.zeros((height // 2, height - 1), np.float32)
    for ho in range(height // 2):
        s[ho, 2 * ho] = 1.0
    return jnp.asarray(s)


def _fc1_regrouped(w_fc1):
    """torch (120, 784) -> (7, 112, 120): grouped by pooled row h, lanes
    ordered (w*16+c) to match the kernel's activation layout."""
    wn = np.asarray(w_fc1, np.float32)
    out = np.zeros((HP, WP * C2, F1), np.float32)
    for h in range(HP):
        for w in range(WP):
            for c in range(C2):
                out[h, w * C2 + c, :] = wn[:, c * (HP * WP) + h * WP + w]
    return jnp.asarray(out)


def prepare_params(params):
    """One-time repack of torch-layout params into kernel layouts."""
    b1 = np.tile(np.asarray(params["b_conv1"], np.float32), W1).reshape(1, -1)
    b2 = np.tile(np.asarray(params["b_conv2"], np.float32), W2).reshape(1, -1)
    return dict(
        s1=_hshift_matrices(H1),
        m1=_conv_shift_mix_matrices(params["w_conv1"], W1),
        b1=jnp.asarray(b1),
        sw1=_wpool_select(W1, C1),
        sh1=_hpool_select(H1),
        s2=_hshift_matrices(H2),
        m2=_conv_shift_mix_matrices(params["w_conv2"], W2),
        b2=jnp.asarray(b2),
        sw2=_wpool_select(W2, C2),
        sh2=_hpool_select(H2),
        wf1=_fc1_regrouped(params["w_fc1"]),
        bf1=jnp.asarray(params["b_fc1"], jnp.float32).reshape(1, F1),
        wf2=jnp.asarray(params["w_fc2"], jnp.float32).T,
        bf2=jnp.asarray(params["b_fc2"], jnp.float32).reshape(1, F2),
        wf3=jnp.asarray(params["w_fc3"], jnp.float32).T,
        bf3=jnp.asarray(params["b_fc3"], jnp.float32).reshape(1, F3),
    )


# --------------------------------- forward ----------------------------------

def forward(prepared, x_nchw):
    B = x_nchw.shape[0]
    xs = x_nchw.reshape(B, H1, W1)                         # Cin = 1

    weights = (prepared["s1"], prepared["m1"], prepared["b1"],
               prepared["sw1"], prepared["sh1"],
               prepared["s2"], prepared["m2"], prepared["b2"],
               prepared["sw2"], prepared["sh2"],
               prepared["wf1"], prepared["bf1"],
               prepared["wf2"], prepared["bf2"],
               prepared["wf3"], prepared["bf3"])

    def full_block(arr):
        nd = arr.ndim
        return pl.BlockSpec(arr.shape, lambda i, _nd=nd: (0,) * _nd)

    out = pl.pallas_call(
        _fused_forward_kernel,
        out_shape=jax.ShapeDtypeStruct((B, 1, F3), jnp.float32),
        grid=(B,),
        in_specs=[pl.BlockSpec((1, H1, W1), lambda i: (i, 0, 0))]
                 + [full_block(w) for w in weights],
        out_specs=pl.BlockSpec((1, 1, F3), lambda i: (i, 0, 0)),
        compiler_params=pltpu.CompilerParams(
            dimension_semantics=("parallel",)),
    )(xs, *weights)
    return out.reshape(B, F3)


# ------------------------- params / reference / main ------------------------

def init_params(key):
    ks = jax.random.split(key, 10)

    def uni(k, shape, fan_in):
        bound = 1.0 / float(np.sqrt(fan_in))
        return jax.random.uniform(k, shape, jnp.float32, -bound, bound)

    return {
        "w_conv1": uni(ks[0], (6, 1, 3, 3), 9),
        "b_conv1": uni(ks[1], (6,), 9),
        "w_conv2": uni(ks[2], (16, 6, 3, 3), 54),
        "b_conv2": uni(ks[3], (16,), 54),
        "w_fc1": uni(ks[4], (F1, C2 * HP * WP), C2 * HP * WP),
        "b_fc1": uni(ks[5], (F1,), C2 * HP * WP),
        "w_fc2": uni(ks[6], (F2, F1), F1),
        "b_fc2": uni(ks[7], (F2,), F1),
        "w_fc3": uni(ks[8], (F3, F2), F2),
        "b_fc3": uni(ks[9], (F3,), F2),
    }


def reference_forward(params, x):
    """Plain-XLA reference with the exact PyTorch semantics (for validation)."""
    hi = jax.lax.Precision.HIGHEST

    def conv(z, w, b):
        y = jax.lax.conv_general_dilated(
            z, w, window_strides=(1, 1), padding=((1, 1), (1, 1)),
            dimension_numbers=("NCHW", "OIHW", "NCHW"), precision=hi)
        return y + b[None, :, None, None]

    def pool(z):
        return jax.lax.reduce_window(z, -jnp.inf, jax.lax.max,
                                     (1, 1, 2, 2), (1, 1, 2, 2), "VALID")

    y = pool(jax.nn.relu(conv(x, params["w_conv1"], params["b_conv1"])))
    y = pool(jax.nn.relu(conv(y, params["w_conv2"], params["b_conv2"])))
    y = y.reshape(x.shape[0], -1)                          # torch (c,h,w) order
    y = jnp.dot(y, params["w_fc1"].T, precision=hi) + params["b_fc1"]
    y = jnp.dot(y, params["w_fc2"].T, precision=hi) + params["b_fc2"]
    y = jnp.dot(y, params["w_fc3"].T, precision=hi) + params["b_fc3"]
    return y


if __name__ == "__main__":
    key = jax.random.PRNGKey(0)
    pkey, xkey = jax.random.split(key)
    params = init_params(pkey)
    prepared = prepare_params(params)          # one-time host-side repack

    # 28x28 input is implied by the 16*7*7 flatten in the module.
    x = jax.random.normal(xkey, (2, 1, 28, 28), dtype=jnp.float32)

    out = jax.jit(forward)(prepared, x)
    out = jax.block_until_ready(out)
    assert out.shape == (2, 10) and out.dtype == jnp.float32

    ref = reference_forward(params, x)
    assert bool(jnp.allclose(out, ref, atol=5e-2, rtol=5e-2)), (
        "max abs err = %f" % float(jnp.max(jnp.abs(out - ref))))

    print("KERNEL_OK")
</pallas_src>

<mosaic_0001>
module attributes {stable_mosaic.version = 11 : i64} {
  func.func @_fused_forward_kernel(%arg0: i32, %arg1: memref<1x28x28xf32, #tpu.memory_space<vmem>>, %arg2: memref<3x28x28xf32, #tpu.memory_space<vmem>>, %arg3: memref<3x28x168xf32, #tpu.memory_space<vmem>>, %arg4: memref<1x168xf32, #tpu.memory_space<vmem>>, %arg5: memref<162x84xf32, #tpu.memory_space<vmem>>, %arg6: memref<14x27xf32, #tpu.memory_space<vmem>>, %arg7: memref<3x14x14xf32, #tpu.memory_space<vmem>>, %arg8: memref<3x84x224xf32, #tpu.memory_space<vmem>>, %arg9: memref<1x224xf32, #tpu.memory_space<vmem>>, %arg10: memref<208x112xf32, #tpu.memory_space<vmem>>, %arg11: memref<7x13xf32, #tpu.memory_space<vmem>>, %arg12: memref<7x112x120xf32, #tpu.memory_space<vmem>>, %arg13: memref<1x120xf32, #tpu.memory_space<vmem>>, %arg14: memref<120x84xf32, #tpu.memory_space<vmem>>, %arg15: memref<1x84xf32, #tpu.memory_space<vmem>>, %arg16: memref<84x10xf32, #tpu.memory_space<vmem>>, %arg17: memref<1x10xf32, #tpu.memory_space<vmem>>, %arg18: memref<1x1x10xf32, #tpu.memory_space<vmem>>) attributes {dimension_semantics = [#tpu.dimension_semantics<parallel>], iteration_bounds = array<i64: 2>, scalar_prefetch = 0 : i64, scratch_operands = 0 : i64, tpu.core_type = #tpu.core_type<tc>, window_params = [{transform_indices = @transform_0, window_bounds = array<i64: 1, 28, 28>}, {pipeline_mode = #tpu.pipeline_mode<synchronous>, transform_indices = @transform_1, window_bounds = array<i64: 3, 28, 28>}, {pipeline_mode = #tpu.pipeline_mode<synchronous>, transform_indices = @transform_2, window_bounds = array<i64: 3, 28, 168>}, {pipeline_mode = #tpu.pipeline_mode<synchronous>, transform_indices = @transform_3, window_bounds = array<i64: 1, 168>}, {pipeline_mode = #tpu.pipeline_mode<synchronous>, transform_indices = @transform_4, window_bounds = array<i64: 162, 84>}, {pipeline_mode = #tpu.pipeline_mode<synchronous>, transform_indices = @transform_5, window_bounds = array<i64: 14, 27>}, {pipeline_mode = #tpu.pipeline_mode<synchronous>, transform_indices = @transform_6, window_bounds = array<i64: 3, 14, 14>}, {pipeline_mode = #tpu.pipeline_mode<synchronous>, transform_indices = @transform_7, window_bounds = array<i64: 3, 84, 224>}, {pipeline_mode = #tpu.pipeline_mode<synchronous>, transform_indices = @transform_8, window_bounds = array<i64: 1, 224>}, {pipeline_mode = #tpu.pipeline_mode<synchronous>, transform_indices = @transform_9, window_bounds = array<i64: 208, 112>}, {pipeline_mode = #tpu.pipeline_mode<synchronous>, transform_indices = @transform_10, window_bounds = array<i64: 7, 13>}, {pipeline_mode = #tpu.pipeline_mode<synchronous>, transform_indices = @transform_11, window_bounds = array<i64: 7, 112, 120>}, {pipeline_mode = #tpu.pipeline_mode<synchronous>, transform_indices = @transform_12, window_bounds = array<i64: 1, 120>}, {pipeline_mode = #tpu.pipeline_mode<synchronous>, transform_indices = @transform_13, window_bounds = array<i64: 120, 84>}, {pipeline_mode = #tpu.pipeline_mode<synchronous>, transform_indices = @transform_14, window_bounds = array<i64: 1, 84>}, {pipeline_mode = #tpu.pipeline_mode<synchronous>, transform_indices = @transform_15, window_bounds = array<i64: 84, 10>}, {pipeline_mode = #tpu.pipeline_mode<synchronous>, transform_indices = @transform_16, window_bounds = array<i64: 1, 10>}, {transform_indices = @transform_17, window_bounds = array<i64: 1, 1, 10>}]} {
    %c0 = arith.constant 0 : index
    %c0_0 = arith.constant 0 : index
    %c0_1 = arith.constant 0 : index
    %0 = vector.load %arg1[%c0, %c0_0, %c0_1] : memref<1x28x28xf32, #tpu.memory_space<vmem>>, vector<1x28x28xf32>
    %1 = vector.shape_cast %0 : vector<1x28x28xf32> to vector<28x28xf32>
    %cst = arith.constant 0.000000e+00 : f32
    %2 = vector.broadcast %cst : f32 to vector<28x168xf32>
    %c0_2 = arith.constant 0 : index
    %c0_3 = arith.constant 0 : index
    %c0_4 = arith.constant 0 : index
    %3 = vector.load %arg2[%c0_2, %c0_3, %c0_4] : memref<3x28x28xf32, #tpu.memory_space<vmem>>, vector<1x28x28xf32>
    %4 = vector.shape_cast %3 : vector<1x28x28xf32> to vector<28x28xf32>
    %cst_5 = arith.constant dense<0.000000e+00> : vector<28x28xf32>
    %5 = tpu.matmul %4, %1, %cst_5 {dimension_numbers = #tpu.dot_dimension_numbers<[1], [0], [0], [1], [0, 0, 1, 1], [], []>} : vector<28x28xf32>, vector<28x28xf32>, vector<28x28xf32> -> vector<28x28xf32>
    %c0_6 = arith.constant 0 : index
    %c0_7 = arith.constant 0 : index
    %c0_8 = arith.constant 0 : index
    %6 = vector.load %arg3[%c0_6, %c0_7, %c0_8] : memref<3x28x168xf32, #tpu.memory_space<vmem>>, vector<1x28x168xf32>
    %7 = vector.shape_cast %6 : vector<1x28x168xf32> to vector<28x168xf32>
    %cst_9 = arith.constant dense<0.000000e+00> : vector<28x168xf32>
    %8 = tpu.matmul %5, %7, %cst_9 {dimension_numbers = #tpu.dot_dimension_numbers<[1], [0], [0], [1], [0, 0, 1, 1], [], []>} : vector<28x28xf32>, vector<28x168xf32>, vector<28x168xf32> -> vector<28x168xf32>
    %9 = arith.addf %2, %8 : vector<28x168xf32>
    %c1 = arith.constant 1 : index
    %c0_10 = arith.constant 0 : index
    %c0_11 = arith.constant 0 : index
    %10 = vector.load %arg2[%c1, %c0_10, %c0_11] : memref<3x28x28xf32, #tpu.memory_space<vmem>>, vector<1x28x28xf32>
    %11 = vector.shape_cast %10 : vector<1x28x28xf32> to vector<28x28xf32>
    %cst_12 = arith.constant dense<0.000000e+00> : vector<28x28xf32>
    %12 = tpu.matmul %11, %1, %cst_12 {dimension_numbers = #tpu.dot_dimension_numbers<[1], [0], [0], [1], [0, 0, 1, 1], [], []>} : vector<28x28xf32>, vector<28x28xf32>, vector<28x28xf32> -> vector<28x28xf32>
    %c1_13 = arith.constant 1 : index
    %c0_14 = arith.constant 0 : index
    %c0_15 = arith.constant 0 : index
    %13 = vector.load %arg3[%c1_13, %c0_14, %c0_15] : memref<3x28x168xf32, #tpu.memory_space<vmem>>, vector<1x28x168xf32>
    %14 = vector.shape_cast %13 : vector<1x28x168xf32> to vector<28x168xf32>
    %cst_16 = arith.constant dense<0.000000e+00> : vector<28x168xf32>
    %15 = tpu.matmul %12, %14, %cst_16 {dimension_numbers = #tpu.dot_dimension_numbers<[1], [0], [0], [1], [0, 0, 1, 1], [], []>} : vector<28x28xf32>, vector<28x168xf32>, vector<28x168xf32> -> vector<28x168xf32>
    %16 = arith.addf %9, %15 : vector<28x168xf32>
    %c2 = arith.constant 2 : index
    %c0_17 = arith.constant 0 : index
    %c0_18 = arith.constant 0 : index
    %17 = vector.load %arg2[%c2, %c0_17, %c0_18] : memref<3x28x28xf32, #tpu.memory_space<vmem>>, vector<1x28x28xf32>
    %18 = vector.shape_cast %17 : vector<1x28x28xf32> to vector<28x28xf32>
    %cst_19 = arith.constant dense<0.000000e+00> : vector<28x28xf32>
    %19 = tpu.matmul %18, %1, %cst_19 {dimension_numbers = #tpu.dot_dimension_numbers<[1], [0], [0], [1], [0, 0, 1, 1], [], []>} : vector<28x28xf32>, vector<28x28xf32>, vector<28x28xf32> -> vector<28x28xf32>
    %c2_20 = arith.constant 2 : index
    %c0_21 = arith.constant 0 : index
    %c0_22 = arith.constant 0 : index
    %20 = vector.load %arg3[%c2_20, %c0_21, %c0_22] : memref<3x28x168xf32, #tpu.memory_space<vmem>>, vector<1x28x168xf32>
    %21 = vector.shape_cast %20 : vector<1x28x168xf32> to vector<28x168xf32>
    %cst_23 = arith.constant dense<0.000000e+00> : vector<28x168xf32>
    %22 = tpu.matmul %19, %21, %cst_23 {dimension_numbers = #tpu.dot_dimension_numbers<[1], [0], [0], [1], [0, 0, 1, 1], [], []>} : vector<28x28xf32>, vector<28x168xf32>, vector<28x168xf32> -> vector<28x168xf32>
    %23 = arith.addf %16, %22 : vector<28x168xf32>
    %c0_24 = arith.constant 0 : index
    %c0_25 = arith.constant 0 : index
    %24 = vector.load %arg4[%c0_24, %c0_25] : memref<1x168xf32, #tpu.memory_space<vmem>>, vector<1x168xf32>
    %25 = vector.broadcast %24 : vector<1x168xf32> to vector<28x168xf32>
    %26 = arith.addf %23, %25 : vector<28x168xf32>
    %cst_26 = arith.constant 0.000000e+00 : f32
    %27 = vector.broadcast %cst_26 : f32 to vector<28x168xf32>
    %28 = arith.maximumf %26, %27 : vector<28x168xf32>
    %29 = vector.extract_strided_slice %28 {offsets = [0, 0], sizes = [28, 162], strides = [1, 1]} : vector<28x168xf32> to vector<28x162xf32>
    %30 = vector.extract_strided_slice %28 {offsets = [0, 6], sizes = [28, 162], strides = [1, 1]} : vector<28x168xf32> to vector<28x162xf32>
    %31 = arith.maximumf %29, %30 : vector<28x162xf32>
    %c0_27 = arith.constant 0 : index
    %c0_28 = arith.constant 0 : index
    %32 = vector.load %arg5[%c0_27, %c0_28] : memref<162x84xf32, #tpu.memory_space<vmem>>, vector<162x84xf32>
    %cst_29 = arith.constant dense<0.000000e+00> : vector<28x84xf32>
    %33 = tpu.matmul %31, %32, %cst_29 {dimension_numbers = #tpu.dot_dimension_numbers<[1], [0], [0], [1], [0, 0, 1, 1], [], []>} : vector<28x162xf32>, vector<162x84xf32>, vector<28x84xf32> -> vector<28x84xf32>
    %34 = vector.extract_strided_slice %33 {offsets = [0, 0], sizes = [27, 84], strides = [1, 1]} : vector<28x84xf32> to vector<27x84xf32>
    %35 = vector.extract_strided_slice %33 {offsets = [1, 0], sizes = [27, 84], strides = [1, 1]} : vector<28x84xf32> to vector<27x84xf32>
    %36 = arith.maximumf %34, %35 : vector<27x84xf32>
    %c0_30 = arith.constant 0 : index
    %c0_31 = arith.constant 0 : index
    %37 = vector.load %arg6[%c0_30, %c0_31] : memref<14x27xf32, #tpu.memory_space<vmem>>, vector<14x27xf32>
    %cst_32 = arith.constant dense<0.000000e+00> : vector<14x84xf32>
    %38 = tpu.matmul %37, %36, %cst_32 {dimension_numbers = #tpu.dot_dimension_numbers<[1], [0], [0], [1], [0, 0, 1, 1], [], []>} : vector<14x27xf32>, vector<27x84xf32>, vector<14x84xf32> -> vector<14x84xf32>
    %cst_33 = arith.constant 0.000000e+00 : f32
    %39 = vector.broadcast %cst_33 : f32 to vector<14x224xf32>
    %c0_34 = arith.constant 0 : index
    %c0_35 = arith.constant 0 : index
    %c0_36 = arith.constant 0 : index
    %40 = vector.load %arg7[%c0_34, %c0_35, %c0_36] : memref<3x14x14xf32, #tpu.memory_space<vmem>>, vector<1x14x14xf32>
    %41 = vector.shape_cast %40 : vector<1x14x14xf32> to vector<14x14xf32>
    %cst_37 = arith.constant dense<0.000000e+00> : vector<14x84xf32>
    %42 = tpu.matmul %41, %38, %cst_37 {dimension_numbers = #tpu.dot_dimension_numbers<[1], [0], [0], [1], [0, 0, 1, 1], [], []>} : vector<14x14xf32>, vector<14x84xf32>, vector<14x84xf32> -> vector<14x84xf32>
    %c0_38 = arith.constant 0 : index
    %c0_39 = arith.constant 0 : index
    %c0_40 = arith.constant 0 : index
    %43 = vector.load %arg8[%c0_38, %c0_39, %c0_40] : memref<3x84x224xf32, #tpu.memory_space<vmem>>, vector<1x84x224xf32>
    %44 = vector.shape_cast %43 : vector<1x84x224xf32> to vector<84x224xf32>
    %cst_41 = arith.constant dense<0.000000e+00> : vector<14x224xf32>
    %45 = tpu.matmul %42, %44, %cst_41 {dimension_numbers = #tpu.dot_dimension_numbers<[1], [0], [0], [1], [0, 0, 1, 1], [], []>} : vector<14x84xf32>, vector<84x224xf32>, vector<14x224xf32> -> vector<14x224xf32>
    %46 = arith.addf %39, %45 : vector<14x224xf32>
    %c1_42 = arith.constant 1 : index
    %c0_43 = arith.constant 0 : index
    %c0_44 = arith.constant 0 : index
    %47 = vector.load %arg7[%c1_42, %c0_43, %c0_44] : memref<3x14x14xf32, #tpu.memory_space<vmem>>, vector<1x14x14xf32>
    %48 = vector.shape_cast %47 : vector<1x14x14xf32> to vector<14x14xf32>
    %cst_45 = arith.constant dense<0.000000e+00> : vector<14x84xf32>
    %49 = tpu.matmul %48, %38, %cst_45 {dimension_numbers = #tpu.dot_dimension_numbers<[1], [0], [0], [1], [0, 0, 1, 1], [], []>} : vector<14x14xf32>, vector<14x84xf32>, vector<14x84xf32> -> vector<14x84xf32>
    %c1_46 = arith.constant 1 : index
    %c0_47 = arith.constant 0 : index
    %c0_48 = arith.constant 0 : index
    %50 = vector.load %arg8[%c1_46, %c0_47, %c0_48] : memref<3x84x224xf32, #tpu.memory_space<vmem>>, vector<1x84x224xf32>
    %51 = vector.shape_cast %50 : vector<1x84x224xf32> to vector<84x224xf32>
    %cst_49 = arith.constant dense<0.000000e+00> : vector<14x224xf32>
    %52 = tpu.matmul %49, %51, %cst_49 {dimension_numbers = #tpu.dot_dimension_numbers<[1], [0], [0], [1], [0, 0, 1, 1], [], []>} : vector<14x84xf32>, vector<84x224xf32>, vector<14x224xf32> -> vector<14x224xf32>
    %53 = arith.addf %46, %52 : vector<14x224xf32>
    %c2_50 = arith.constant 2 : index
    %c0_51 = arith.constant 0 : index
    %c0_52 = arith.constant 0 : index
    %54 = vector.load %arg7[%c2_50, %c0_51, %c0_52] : memref<3x14x14xf32, #tpu.memory_space<vmem>>, vector<1x14x14xf32>
    %55 = vector.shape_cast %54 : vector<1x14x14xf32> to vector<14x14xf32>
    %cst_53 = arith.constant dense<0.000000e+00> : vector<14x84xf32>
    %56 = tpu.matmul %55, %38, %cst_53 {dimension_numbers = #tpu.dot_dimension_numbers<[1], [0], [0], [1], [0, 0, 1, 1], [], []>} : vector<14x14xf32>, vector<14x84xf32>, vector<14x84xf32> -> vector<14x84xf32>
    %c2_54 = arith.constant 2 : index
    %c0_55 = arith.constant 0 : index
    %c0_56 = arith.constant 0 : index
    %57 = vector.load %arg8[%c2_54, %c0_55, %c0_56] : memref<3x84x224xf32, #tpu.memory_space<vmem>>, vector<1x84x224xf32>
    %58 = vector.shape_cast %57 : vector<1x84x224xf32> to vector<84x224xf32>
    %cst_57 = arith.constant dense<0.000000e+00> : vector<14x224xf32>
    %59 = tpu.matmul %56, %58, %cst_57 {dimension_numbers = #tpu.dot_dimension_numbers<[1], [0], [0], [1], [0, 0, 1, 1], [], []>} : vector<14x84xf32>, vector<84x224xf32>, vector<14x224xf32> -> vector<14x224xf32>
    %60 = arith.addf %53, %59 : vector<14x224xf32>
    %c0_58 = arith.constant 0 : index
    %c0_59 = arith.constant 0 : index
    %61 = vector.load %arg9[%c0_58, %c0_59] : memref<1x224xf32, #tpu.memory_space<vmem>>, vector<1x224xf32>
    %62 = vector.broadcast %61 : vector<1x224xf32> to vector<14x224xf32>
    %63 = arith.addf %60, %62 : vector<14x224xf32>
    %cst_60 = arith.constant 0.000000e+00 : f32
    %64 = vector.broadcast %cst_60 : f32 to vector<14x224xf32>
    %65 = arith.maximumf %63, %64 : vector<14x224xf32>
    %66 = vector.extract_strided_slice %65 {offsets = [0, 0], sizes = [14, 208], strides = [1, 1]} : vector<14x224xf32> to vector<14x208xf32>
    %67 = vector.extract_strided_slice %65 {offsets = [0, 16], sizes = [14, 208], strides = [1, 1]} : vector<14x224xf32> to vector<14x208xf32>
    %68 = arith.maximumf %66, %67 : vector<14x208xf32>
    %c0_61 = arith.constant 0 : index
    %c0_62 = arith.constant 0 : index
    %69 = vector.load %arg10[%c0_61, %c0_62] : memref<208x112xf32, #tpu.memory_space<vmem>>, vector<208x112xf32>
    %cst_63 = arith.constant dense<0.000000e+00> : vector<14x112xf32>
    %70 = tpu.matmul %68, %69, %cst_63 {dimension_numbers = #tpu.dot_dimension_numbers<[1], [0], [0], [1], [0, 0, 1, 1], [], []>} : vector<14x208xf32>, vector<208x112xf32>, vector<14x112xf32> -> vector<14x112xf32>
    %71 = vector.extract_strided_slice %70 {offsets = [0, 0], sizes = [13, 112], strides = [1, 1]} : vector<14x112xf32> to vector<13x112xf32>
    %72 = vector.extract_strided_slice %70 {offsets = [1, 0], sizes = [13, 112], strides = [1, 1]} : vector<14x112xf32> to vector<13x112xf32>
    %73 = arith.maximumf %71, %72 : vector<13x112xf32>
    %c0_64 = arith.constant 0 : index
    %c0_65 = arith.constant 0 : index
    %74 = vector.load %arg11[%c0_64, %c0_65] : memref<7x13xf32, #tpu.memory_space<vmem>>, vector<7x13xf32>
    %cst_66 = arith.constant dense<0.000000e+00> : vector<7x112xf32>
    %75 = tpu.matmul %74, %73, %cst_66 {dimension_numbers = #tpu.dot_dimension_numbers<[1], [0], [0], [1], [0, 0, 1, 1], [], []>} : vector<7x13xf32>, vector<13x112xf32>, vector<7x112xf32> -> vector<7x112xf32>
    %c0_67 = arith.constant 0 : index
    %c0_68 = arith.constant 0 : index
    %76 = vector.load %arg13[%c0_67, %c0_68] : memref<1x120xf32, #tpu.memory_space<vmem>>, vector<1x120xf32>
    %77 = vector.extract_strided_slice %75 {offsets = [0, 0], sizes = [1, 112], strides = [1, 1]} : vector<7x112xf32> to vector<1x112xf32>
    %c0_69 = arith.constant 0 : index
    %c0_70 = arith.constant 0 : index
    %c0_71 = arith.constant 0 : index
    %78 = vector.load %arg12[%c0_69, %c0_70, %c0_71] : memref<7x112x120xf32, #tpu.memory_space<vmem>>, vector<1x112x120xf32>
    %79 = vector.shape_cast %78 : vector<1x112x120xf32> to vector<112x120xf32>
    %cst_72 = arith.constant dense<0.000000e+00> : vector<1x120xf32>
    %80 = tpu.matmul %77, %79, %cst_72 {dimension_numbers = #tpu.dot_dimension_numbers<[1], [0], [0], [1], [0, 0, 1, 1], [], []>} : vector<1x112xf32>, vector<112x120xf32>, vector<1x120xf32> -> vector<1x120xf32>
    %81 = arith.addf %76, %80 : vector<1x120xf32>
    %82 = vector.extract_strided_slice %75 {offsets = [1, 0], sizes = [1, 112], strides = [1, 1]} : vector<7x112xf32> to vector<1x112xf32>
    %c1_73 = arith.constant 1 : index
    %c0_74 = arith.constant 0 : index
    %c0_75 = arith.constant 0 : index
    %83 = vector.load %arg12[%c1_73, %c0_74, %c0_75] : memref<7x112x120xf32, #tpu.memory_space<vmem>>, vector<1x112x120xf32>
    %84 = vector.shape_cast %83 : vector<1x112x120xf32> to vector<112x120xf32>
    %cst_76 = arith.constant dense<0.000000e+00> : vector<1x120xf32>
    %85 = tpu.matmul %82, %84, %cst_76 {dimension_numbers = #tpu.dot_dimension_numbers<[1], [0], [0], [1], [0, 0, 1, 1], [], []>} : vector<1x112xf32>, vector<112x120xf32>, vector<1x120xf32> -> vector<1x120xf32>
    %86 = arith.addf %81, %85 : vector<1x120xf32>
    %87 = vector.extract_strided_slice %75 {offsets = [2, 0], sizes = [1, 112], strides = [1, 1]} : vector<7x112xf32> to vector<1x112xf32>
    %c2_77 = arith.constant 2 : index
    %c0_78 = arith.constant 0 : index
    %c0_79 = arith.constant 0 : index
    %88 = vector.load %arg12[%c2_77, %c0_78, %c0_79] : memref<7x112x120xf32, #tpu.memory_space<vmem>>, vector<1x112x120xf32>
    %89 = vector.shape_cast %88 : vector<1x112x120xf32> to vector<112x120xf32>
    %cst_80 = arith.constant dense<0.000000e+00> : vector<1x120xf32>
    %90 = tpu.matmul %87, %89, %cst_80 {dimension_numbers = #tpu.dot_dimension_numbers<[1], [0], [0], [1], [0, 0, 1, 1], [], []>} : vector<1x112xf32>, vector<112x120xf32>, vector<1x120xf32> -> vector<1x120xf32>
    %91 = arith.addf %86, %90 : vector<1x120xf32>
    %92 = vector.extract_strided_slice %75 {offsets = [3, 0], sizes = [1, 112], strides = [1, 1]} : vector<7x112xf32> to vector<1x112xf32>
    %c3 = arith.constant 3 : index
    %c0_81 = arith.constant 0 : index
    %c0_82 = arith.constant 0 : index
    %93 = vector.load %arg12[%c3, %c0_81, %c0_82] : memref<7x112x120xf32, #tpu.memory_space<vmem>>, vector<1x112x120xf32>
    %94 = vector.shape_cast %93 : vector<1x112x120xf32> to vector<112x120xf32>
    %cst_83 = arith.constant dense<0.000000e+00> : vector<1x120xf32>
    %95 = tpu.matmul %92, %94, %cst_83 {dimension_numbers = #tpu.dot_dimension_numbers<[1], [0], [0], [1], [0, 0, 1, 1], [], []>} : vector<1x112xf32>, vector<112x120xf32>, vector<1x120xf32> -> vector<1x120xf32>
    %96 = arith.addf %91, %95 : vector<1x120xf32>
    %97 = vector.extract_strided_slice %75 {offsets = [4, 0], sizes = [1, 112], strides = [1, 1]} : vector<7x112xf32> to vector<1x112xf32>
    %c4 = arith.constant 4 : index
    %c0_84 = arith.constant 0 : index
    %c0_85 = arith.constant 0 : index
    %98 = vector.load %arg12[%c4, %c0_84, %c0_85] : memref<7x112x120xf32, #tpu.memory_space<vmem>>, vector<1x112x120xf32>
    %99 = vector.shape_cast %98 : vector<1x112x120xf32> to vector<112x120xf32>
    %cst_86 = arith.constant dense<0.000000e+00> : vector<1x120xf32>
    %100 = tpu.matmul %97, %99, %cst_86 {dimension_numbers = #tpu.dot_dimension_numbers<[1], [0], [0], [1], [0, 0, 1, 1], [], []>} : vector<1x112xf32>, vector<112x120xf32>, vector<1x120xf32> -> vector<1x120xf32>
    %101 = arith.addf %96, %100 : vector<1x120xf32>
    %102 = vector.extract_strided_slice %75 {offsets = [5, 0], sizes = [1, 112], strides = [1, 1]} : vector<7x112xf32> to vector<1x112xf32>
    %c5 = arith.constant 5 : index
    %c0_87 = arith.constant 0 : index
    %c0_88 = arith.constant 0 : index
    %103 = vector.load %arg12[%c5, %c0_87, %c0_88] : memref<7x112x120xf32, #tpu.memory_space<vmem>>, vector<1x112x120xf32>
    %104 = vector.shape_cast %103 : vector<1x112x120xf32> to vector<112x120xf32>
    %cst_89 = arith.constant dense<0.000000e+00> : vector<1x120xf32>
    %105 = tpu.matmul %102, %104, %cst_89 {dimension_numbers = #tpu.dot_dimension_numbers<[1], [0], [0], [1], [0, 0, 1, 1], [], []>} : vector<1x112xf32>, vector<112x120xf32>, vector<1x120xf32> -> vector<1x120xf32>
    %106 = arith.addf %101, %105 : vector<1x120xf32>
    %107 = vector.extract_strided_slice %75 {offsets = [6, 0], sizes = [1, 112], strides = [1, 1]} : vector<7x112xf32> to vector<1x112xf32>
    %c6 = arith.constant 6 : index
    %c0_90 = arith.constant 0 : index
    %c0_91 = arith.constant 0 : index
    %108 = vector.load %arg12[%c6, %c0_90, %c0_91] : memref<7x112x120xf32, #tpu.memory_space<vmem>>, vector<1x112x120xf32>
    %109 = vector.shape_cast %108 : vector<1x112x120xf32> to vector<112x120xf32>
    %cst_92 = arith.constant dense<0.000000e+00> : vector<1x120xf32>
    %110 = tpu.matmul %107, %109, %cst_92 {dimension_numbers = #tpu.dot_dimension_numbers<[1], [0], [0], [1], [0, 0, 1, 1], [], []>} : vector<1x112xf32>, vector<112x120xf32>, vector<1x120xf32> -> vector<1x120xf32>
    %111 = arith.addf %106, %110 : vector<1x120xf32>
    %c0_93 = arith.constant 0 : index
    %c0_94 = arith.constant 0 : index
    %112 = vector.load %arg14[%c0_93, %c0_94] : memref<120x84xf32, #tpu.memory_space<vmem>>, vector<120x84xf32>
    %cst_95 = arith.constant dense<0.000000e+00> : vector<1x84xf32>
    %113 = tpu.matmul %111, %112, %cst_95 {dimension_numbers = #tpu.dot_dimension_numbers<[1], [0], [0], [1], [0, 0, 1, 1], [], []>} : vector<1x120xf32>, vector<120x84xf32>, vector<1x84xf32> -> vector<1x84xf32>
    %c0_96 = arith.constant 0 : index
    %c0_97 = arith.constant 0 : index
    %114 = vector.load %arg15[%c0_96, %c0_97] : memref<1x84xf32, #tpu.memory_space<vmem>>, vector<1x84xf32>
    %115 = arith.addf %113, %114 : vector<1x84xf32>
    %c0_98 = arith.constant 0 : index
    %c0_99 = arith.constant 0 : index
    %116 = vector.load %arg16[%c0_98, %c0_99] : memref<84x10xf32, #tpu.memory_space<vmem>>, vector<84x10xf32>
    %cst_100 = arith.constant dense<0.000000e+00> : vector<1x10xf32>
    %117 = tpu.matmul %115, %116, %cst_100 {dimension_numbers = #tpu.dot_dimension_numbers<[1], [0], [0], [1], [0, 0, 1, 1], [], []>} : vector<1x84xf32>, vector<84x10xf32>, vector<1x10xf32> -> vector<1x10xf32>
    %c0_101 = arith.constant 0 : index
    %c0_102 = arith.constant 0 : index
    %118 = vector.load %arg17[%c0_101, %c0_102] : memref<1x10xf32, #tpu.memory_space<vmem>>, vector<1x10xf32>
    %119 = arith.addf %117, %118 : vector<1x10xf32>
    %c0_103 = arith.constant 0 : index
    %c0_104 = arith.constant 0 : index
    %c0_105 = arith.constant 0 : index
    %120 = vector.load %arg18[%c0_103, %c0_104, %c0_105] : memref<1x1x10xf32, #tpu.memory_space<vmem>>, vector<1x1x10xf32>
    %121 = vector.shape_cast %120 : vector<1x1x10xf32> to vector<1x10xf32>
    %122 = vector.shape_cast %119 : vector<1x10xf32> to vector<1x1x10xf32>
    tpu.vector_store %arg18[%c0_103, %c0_104, %c0_105], %122 {strides = array<i32>} : memref<1x1x10xf32, #tpu.memory_space<vmem>>, vector<1x1x10xf32>,
    return
  }
  func.func @transform_0(%arg0: i32) -> (i32, i32, i32) {
    %c0_i32 = arith.constant 0 : i32
    %c0_i32_0 = arith.constant 0 : i32
    %c0_i32_1 = arith.constant 0 : i32
    return %arg0, %c0_i32, %c0_i32_0 : i32, i32, i32
  }
  func.func @transform_1(%arg0: i32) -> (i32, i32, i32) {
    %c0_i32 = arith.constant 0 : i32
    %c0_i32_0 = arith.constant 0 : i32
    %c0_i32_1 = arith.constant 0 : i32
    %c0_i32_2 = arith.constant 0 : i32
    return %c0_i32, %c0_i32_0, %c0_i32_1 : i32, i32, i32
  }
  func.func @transform_2(%arg0: i32) -> (i32, i32, i32) {
    %c0_i32 = arith.constant 0 : i32
    %c0_i32_0 = arith.constant 0 : i32
    %c0_i32_1 = arith.constant 0 : i32
    %c0_i32_2 = arith.constant 0 : i32
    return %c0_i32, %c0_i32_0, %c0_i32_1 : i32, i32, i32
  }
  func.func @transform_3(%arg0: i32) -> (i32, i32) {
    %c0_i32 = arith.constant 0 : i32
    %c0_i32_0 = arith.constant 0 : i32
    %c0_i32_1 = arith.constant 0 : i32
    return %c0_i32, %c0_i32_0 : i32, i32
  }
  func.func @transform_4(%arg0: i32) -> (i32, i32) {
    %c0_i32 = arith.constant 0 : i32
    %c0_i32_0 = arith.constant 0 : i32
    %c0_i32_1 = arith.constant 0 : i32
    return %c0_i32, %c0_i32_0 : i32, i32
  }
  func.func @transform_5(%arg0: i32) -> (i32, i32) {
    %c0_i32 = arith.constant 0 : i32
    %c0_i32_0 = arith.constant 0 : i32
    %c0_i32_1 = arith.constant 0 : i32
    return %c0_i32, %c0_i32_0 : i32, i32
  }
  func.func @transform_6(%arg0: i32) -> (i32, i32, i32) {
    %c0_i32 = arith.constant 0 : i32
    %c0_i32_0 = arith.constant 0 : i32
    %c0_i32_1 = arith.constant 0 : i32
    %c0_i32_2 = arith.constant 0 : i32
    return %c0_i32, %c0_i32_0, %c0_i32_1 : i32, i32, i32
  }
  func.func @transform_7(%arg0: i32) -> (i32, i32, i32) {
    %c0_i32 = arith.constant 0 : i32
    %c0_i32_0 = arith.constant 0 : i32
    %c0_i32_1 = arith.constant 0 : i32
    %c0_i32_2 = arith.constant 0 : i32
    return %c0_i32, %c0_i32_0, %c0_i32_1 : i32, i32, i32
  }
  func.func @transform_8(%arg0: i32) -> (i32, i32) {
    %c0_i32 = arith.constant 0 : i32
    %c0_i32_0 = arith.constant 0 : i32
    %c0_i32_1 = arith.constant 0 : i32
    return %c0_i32, %c0_i32_0 : i32, i32
  }
  func.func @transform_9(%arg0: i32) -> (i32, i32) {
    %c0_i32 = arith.constant 0 : i32
    %c0_i32_0 = arith.constant 0 : i32
    %c0_i32_1 = arith.constant 0 : i32
    return %c0_i32, %c0_i32_0 : i32, i32
  }
  func.func @transform_10(%arg0: i32) -> (i32, i32) {
    %c0_i32 = arith.constant 0 : i32
    %c0_i32_0 = arith.constant 0 : i32
    %c0_i32_1 = arith.constant 0 : i32
    return %c0_i32, %c0_i32_0 : i32, i32
  }
  func.func @transform_11(%arg0: i32) -> (i32, i32, i32) {
    %c0_i32 = arith.constant 0 : i32
    %c0_i32_0 = arith.constant 0 : i32
    %c0_i32_1 = arith.constant 0 : i32
    %c0_i32_2 = arith.constant 0 : i32
    return %c0_i32, %c0_i32_0, %c0_i32_1 : i32, i32, i32
  }
  func.func @transform_12(%arg0: i32) -> (i32, i32) {
    %c0_i32 = arith.constant 0 : i32
    %c0_i32_0 = arith.constant 0 : i32
    %c0_i32_1 = arith.constant 0 : i32
    return %c0_i32, %c0_i32_0 : i32, i32
  }
  func.func @transform_13(%arg0: i32) -> (i32, i32) {
    %c0_i32 = arith.constant 0 : i32
    %c0_i32_0 = arith.constant 0 : i32
    %c0_i32_1 = arith.constant 0 : i32
    return %c0_i32, %c0_i32_0 : i32, i32
  }
  func.func @transform_14(%arg0: i32) -> (i32, i32) {
    %c0_i32 = arith.constant 0 : i32
    %c0_i32_0 = arith.constant 0 : i32
    %c0_i32_1 = arith.constant 0 : i32
    return %c0_i32, %c0_i32_0 : i32, i32
  }
  func.func @transform_15(%arg0: i32) -> (i32, i32) {
    %c0_i32 = arith.constant 0 : i32
    %c0_i32_0 = arith.constant 0 : i32
    %c0_i32_1 = arith.constant 0 : i32
    return %c0_i32, %c0_i32_0 : i32, i32
  }
  func.func @transform_16(%arg0: i32) -> (i32, i32) {
    %c0_i32 = arith.constant 0 : i32
    %c0_i32_0 = arith.constant 0 : i32
    %c0_i32_1 = arith.constant 0 : i32
    return %c0_i32, %c0_i32_0 : i32, i32
  }
  func.func @transform_17(%arg0: i32) -> (i32, i32, i32) {
    %c0_i32 = arith.constant 0 : i32
    %c0_i32_0 = arith.constant 0 : i32
    %c0_i32_1 = arith.constant 0 : i32
    return %arg0, %c0_i32, %c0_i32_0 : i32, i32, i32
  }
}

</mosaic_0001>

<llo_original>
// kernel: forward.1
$region0: #{forward.1}
  #allocation0 [shape = 'u32[]', space=smem, size = 0x4, offset = 0x4, fixed_abs, tag = 'smem constant byte address 0x4 - core index']
  #allocation1 [shape = 'u32[72,128]{1,0:T(1,128)}', space=vmem, size = 0x9000, scoped, tag = 'internal scratch']
  %s0 = inlined_call_operand.vmem [shape: f32[2,28,28], index: 0, kind: input, shape index: {}]
  %s1 = inlined_call_operand.vmem [shape: f32[3,28,28], index: 1, kind: input, shape index: {}]
  %s2 = inlined_call_operand.hbm [shape: f32[3,28,168], index: 2, kind: input, shape index: {}]
  %s3 = inlined_call_operand.vmem [shape: f32[1,168], index: 3, kind: input, shape index: {}]
  %s4 = inlined_call_operand.hbm [shape: f32[162,84], index: 4, kind: input, shape index: {}]
  %s5 = inlined_call_operand.vmem [shape: f32[14,27], index: 5, kind: input, shape index: {}]
  %s6 = inlined_call_operand.vmem [shape: f32[3,14,14], index: 6, kind: input, shape index: {}]
  %s7 = inlined_call_operand.hbm [shape: f32[3,84,224], index: 7, kind: input, shape index: {}]
  %s8 = inlined_call_operand.vmem [shape: f32[1,224], index: 8, kind: input, shape index: {}]
  %s9 = inlined_call_operand.vmem [shape: f32[208,112], index: 9, kind: input, shape index: {}]
  %s10 = inlined_call_operand.vmem [shape: f32[7,13], index: 10, kind: input, shape index: {}]
  %s11 = inlined_call_operand.hbm [shape: f32[7,112,120], index: 11, kind: input, shape index: {}]
  %s12 = inlined_call_operand.vmem [shape: f32[1,120], index: 12, kind: input, shape index: {}]
  %s13 = inlined_call_operand.vmem [shape: f32[120,84], index: 13, kind: input, shape index: {}]
  %s14 = inlined_call_operand.vmem [shape: f32[1,84], index: 14, kind: input, shape index: {}]
  %s15 = inlined_call_operand.vmem [shape: f32[84,10], index: 15, kind: input, shape index: {}]
  %s16 = inlined_call_operand.vmem [shape: f32[1,10], index: 16, kind: input, shape index: {}]
  %s17 = inlined_call_operand.hbm [shape: f32[2,1,10], index: 17, kind: output, shape index: {}]
  %s18 = sld [smem:[#allocation0]]
  $region117: #{forward.1} parent=0
    _
  %s20 = ssub.s32 1, %s18
  %s21 = scalar_select 0, %s20, %s18
  $region1: #{forward.1} parent=0
    #allocation2 [shape = 'u8[98304]{0}', space=vmem, size = 0x18000, scoped, tag = 'input window, operand 2, single buffered']
    #allocation3 [shape = 's32[2]{0}', space=sflag, size = 0x8, scoped, tag = 'scoped memory for forward.1']
    #allocation4 [shape = 's32[2]{0}', space=sflag, size = 0x8, scoped, tag = 'scoped memory for forward.1']
    #allocation5 [shape = 'u8[86016]{0}', space=vmem, size = 0x15000, scoped, tag = 'input window, operand 4, single buffered']
    #allocation6 [shape = 's32[1]{0}', space=sflag, size = 0x4, scoped, tag = 'scoped memory for forward.1']
    #allocation7 [shape = 'u8[270336]{0}', space=vmem, size = 0x42000, scoped, tag = 'input window, operand 7, single buffered']
    #allocation8 [shape = 'u8[401408]{0}', space=vmem, size = 0x62000, scoped, tag = 'input window, operand 11, single buffered']
    #allocation9 [shape = 's32[1]{0}', space=sflag, size = 0x4, scoped, tag = 'scoped memory for forward.1']
    #allocation10 [shape = 'u8[1024]{0}', space=vmem, size = 0x400, scoped, tag = 'output window, operand 0']
    %22 = vsyncpa [#allocation3], 0
    %23 = vsyncpa [#allocation6], 0
    %24 = vsyncpa [#allocation9], 0
    %25 = vsyncpa [#allocation4], 0
    %s26 = scalar_lea.sflag [#allocation4], 1
    %27 = vsyncpa %s26, 0
    loop: start=0, step=1, limit=4
    $region2: #{forward.1} parent=1 // loop_pre_header
      _
    $region3: #{forward.1} parent=1 // loop_header
      %s29 = sphi 0, %s33
      %p30 = scmp.ge.s32.totalorder %s29, 4
      %s39 = sphi 0, %s41
      %s42 = sphi 0, %s39
      %s43 = sphi 0, %s42
      %s59 = sphi 0, %s43
      %s63 = sphi 0, %s63
      %s65 = sphi 0, %s63
      %s66 = sphi 0, %s65
      %s80 = sphi 0, %s66
      %s84 = sphi 0, %s84
      %s86 = sphi 0, %s84
      %s87 = sphi 0, %s86
      %s101 = sphi 0, %s87
      %s105 = sphi 0, %s105
      %s107 = sphi 0, %s105
      %s108 = sphi 0, %s107
      %s122 = sphi 0, %s108
      %s126 = sphi 0, %s126
      %s128 = sphi 0, %s126
      %s129 = sphi 0, %s128
      %s143 = sphi 0, %s129
      %s147 = sphi 0, %s147
      %s149 = sphi 0, %s147
      %s150 = sphi 0, %s149
      %s164 = sphi 0, %s150
      %s168 = sphi 0, %s168
      %s170 = sphi 0, %s168
      %s171 = sphi 0, %s170
      %s185 = sphi 0, %s171
      %s189 = sphi 0, %s189
      %s191 = sphi 0, %s189
      %s192 = sphi 0, %s191
      %s206 = sphi 0, %s192
      %s210 = sphi 0, %s210
      %s212 = sphi 0, %s210
      %s213 = sphi 0, %s212
      %s227 = sphi 0, %s213
      %s231 = sphi 0, %s231
      %s233 = sphi 0, %s231
      %s234 = sphi 0, %s233
      %s248 = sphi 0, %s234
      %s252 = sphi 0, %s252
      %s254 = sphi 0, %s252
      %s255 = sphi 0, %s254
      %s269 = sphi 0, %s255
      %s273 = sphi 0, %s273
      %s275 = sphi 0, %s273
      %s276 = sphi 0, %s275
      %s290 = sphi 0, %s276
      %s294 = sphi 0, %s294
      %s296 = sphi 0, %s294
      %s297 = sphi 0, %s296
      %s311 = sphi 0, %s297
      %s315 = sphi 0, %s315
      %s317 = sphi 0, %s315
      %s318 = sphi 0, %s317
      %s332 = sphi 0, %s318
      %s336 = sphi 0, %s336
      %s338 = sphi 0, %s336
      %s339 = sphi 0, %s338
      %s353 = sphi 0, %s339
      %s357 = sphi 0, %s357
      %s359 = sphi 0, %s357
      %s360 = sphi 0, %s359
      %s374 = sphi 0, %s360
      %s378 = sphi 0, %s378
      %s380 = sphi 0, %s378
      %s381 = sphi 0, %s380
      %s395 = sphi 0, %s381
      %s401 = sphi 0, %s403
      %s404 = sphi 0, %s401
      %s405 = sphi 0, %s404
      %s421 = sphi 0, %s405
    $region4: #{forward.1} parent=1 // loop_header_branch
      %32 = sbr.rel (%p30) target = $region8
    $region5: #{forward.1} parent=1 // loop_body
      %s34 = ssub.s32 %s29, 1
      %s35 = ssub.s32 %s29, 2
      %s36 = sadd.s32 %s29, 1
      %s37 = ssub.s32 %s29, %s36
      %p38 = scmp.eq.s32.totalorder %s37, 0
      %s40 = sadd.s32 %s39, 1
      %s41 = scalar_select %p38, %s39, %s40
      %p44 = pneg %p38
      %p45 = scmp.eq.s32.totalorder %s29, 1
      %p46 = por %p44, %p45
      %p47 = scmp.ne.s32.totalorder %s39, %s42
      %p48 = scmp.eq.s32.totalorder %s29, 0
      %p49 = por %p47, %p48
      %p50 = scmp.ne.s32.totalorder %s39, %s42
      %p51 = scmp.eq.s32.totalorder %s34, 1
      %p52 = por %p50, %p51
      %p53 = scmp.ne.s32.totalorder %s42, %s43
      %p54 = scmp.eq.s32.totalorder %s34, 0
      %p55 = por %p53, %p54
      %p56 = scmp.ne.s32.totalorder %s42, %s43
      %p57 = scmp.eq.s32.totalorder %s35, 1
      %p58 = por %p56, %p57
      %p60 = scmp.ne.s32.totalorder %s43, %s59
      %p61 = scmp.eq.s32.totalorder %s35, 0
      %p62 = por %p60, %p61
      %s64 = sadd.s32 %s63, 1
      %p67 = scmp.eq.s32.totalorder %s29, 1
      %p68 = scmp.ne.s32.totalorder %s63, %s65
      %p69 = scmp.eq.s32.totalorder %s29, 0
      %p70 = por %p68, %p69
      %p71 = scmp.ne.s32.totalorder %s63, %s65
      %p72 = scmp.eq.s32.totalorder %s34, 1
      %p73 = por %p71, %p72
      %p74 = scmp.ne.s32.totalorder %s65, %s66
      %p75 = scmp.eq.s32.totalorder %s34, 0
      %p76 = por %p74, %p75
      %p77 = scmp.ne.s32.totalorder %s65, %s66
      %p78 = scmp.eq.s32.totalorder %s35, 1
      %p79 = por %p77, %p78
      %p81 = scmp.ne.s32.totalorder %s66, %s80
      %p82 = scmp.eq.s32.totalorder %s35, 0
      %p83 = por %p81, %p82
      %s85 = sadd.s32 %s84, 1
      %p88 = scmp.eq.s32.totalorder %s29, 1
      %p89 = scmp.ne.s32.totalorder %s84, %s86
      %p90 = scmp.eq.s32.totalorder %s29, 0
      %p91 = por %p89, %p90
      %p92 = scmp.ne.s32.totalorder %s84, %s86
      %p93 = scmp.eq.s32.totalorder %s34, 1
      %p94 = por %p92, %p93
      %p95 = scmp.ne.s32.totalorder %s86, %s87
      %p96 = scmp.eq.s32.totalorder %s34, 0
      %p97 = por %p95, %p96
      %p98 = scmp.ne.s32.totalorder %s86, %s87
      %p99 = scmp.eq.s32.totalorder %s35, 1
      %p100 = por %p98, %p99
      %p102 = scmp.ne.s32.totalorder %s87, %s101
      %p103 = scmp.eq.s32.totalorder %s35, 0
      %p104 = por %p102, %p103
      %s106 = sadd.s32 %s105, 1
      %p109 = scmp.eq.s32.totalorder %s29, 1
      %p110 = scmp.ne.s32.totalorder %s105, %s107
      %p111 = scmp.eq.s32.totalorder %s29, 0
      %p112 = por %p110, %p111
      %p113 = scmp.ne.s32.totalorder %s105, %s107
      %p114 = scmp.eq.s32.totalorder %s34, 1
      %p115 = por %p113, %p114
      %p116 = scmp.ne.s32.totalorder %s107, %s108
      %p117 = scmp.eq.s32.totalorder %s34, 0
      %p118 = por %p116, %p117
      %p119 = scmp.ne.s32.totalorder %s107, %s108
      %p120 = scmp.eq.s32.totalorder %s35, 1
      %p121 = por %p119, %p120
      %p123 = scmp.ne.s32.totalorder %s108, %s122
      %p124 = scmp.eq.s32.totalorder %s35, 0
      %p125 = por %p123, %p124
      %s127 = sadd.s32 %s126, 1
      %p130 = scmp.eq.s32.totalorder %s29, 1
      %p131 = scmp.ne.s32.totalorder %s126, %s128
      %p132 = scmp.eq.s32.totalorder %s29, 0
      %p133 = por %p131, %p132
      %p134 = scmp.ne.s32.totalorder %s126, %s128
      %p135 = scmp.eq.s32.totalorder %s34, 1
      %p136 = por %p134, %p135
      %p137 = scmp.ne.s32.totalorder %s128, %s129
      %p138 = scmp.eq.s32.totalorder %s34, 0
      %p139 = por %p137, %p138
      %p140 = scmp.ne.s32.totalorder %s128, %s129
      %p141 = scmp.eq.s32.totalorder %s35, 1
      %p142 = por %p140, %p141
      %p144 = scmp.ne.s32.totalorder %s129, %s143
      %p145 = scmp.eq.s32.totalorder %s35, 0
      %p146 = por %p144, %p145
      %s148 = sadd.s32 %s147, 1
      %p151 = scmp.eq.s32.totalorder %s29, 1
      %p152 = scmp.ne.s32.totalorder %s147, %s149
      %p153 = scmp.eq.s32.totalorder %s29, 0
      %p154 = por %p152, %p153
      %p155 = scmp.ne.s32.totalorder %s147, %s149
      %p156 = scmp.eq.s32.totalorder %s34, 1
      %p157 = por %p155, %p156
      %p158 = scmp.ne.s32.totalorder %s149, %s150
      %p159 = scmp.eq.s32.totalorder %s34, 0
      %p160 = por %p158, %p159
      %p161 = scmp.ne.s32.totalorder %s149, %s150
      %p162 = scmp.eq.s32.totalorder %s35, 1
      %p163 = por %p161, %p162
      %p165 = scmp.ne.s32.totalorder %s150, %s164
      %p166 = scmp.eq.s32.totalorder %s35, 0
      %p167 = por %p165, %p166
      %s169 = sadd.s32 %s168, 1
      %p172 = scmp.eq.s32.totalorder %s29, 1
      %p173 = scmp.ne.s32.totalorder %s168, %s170
      %p174 = scmp.eq.s32.totalorder %s29, 0
      %p175 = por %p173, %p174
      %p176 = scmp.ne.s32.totalorder %s168, %s170
      %p177 = scmp.eq.s32.totalorder %s34, 1
      %p178 = por %p176, %p177
      %p179 = scmp.ne.s32.totalorder %s170, %s171
      %p180 = scmp.eq.s32.totalorder %s34, 0
      %p181 = por %p179, %p180
      %p182 = scmp.ne.s32.totalorder %s170, %s171
      %p183 = scmp.eq.s32.totalorder %s35, 1
      %p184 = por %p182, %p183
      %p186 = scmp.ne.s32.totalorder %s171, %s185
      %p187 = scmp.eq.s32.totalorder %s35, 0
      %p188 = por %p186, %p187
      %s190 = sadd.s32 %s189, 1
      %p193 = scmp.eq.s32.totalorder %s29, 1
      %p194 = scmp.ne.s32.totalorder %s189, %s191
      %p195 = scmp.eq.s32.totalorder %s29, 0
      %p196 = por %p194, %p195
      %p197 = scmp.ne.s32.totalorder %s189, %s191
      %p198 = scmp.eq.s32.totalorder %s34, 1
      %p199 = por %p197, %p198
      %p200 = scmp.ne.s32.totalorder %s191, %s192
      %p201 = scmp.eq.s32.totalorder %s34, 0
      %p202 = por %p200, %p201
      %p203 = scmp.ne.s32.totalorder %s191, %s192
      %p204 = scmp.eq.s32.totalorder %s35, 1
      %p205 = por %p203, %p204
      %p207 = scmp.ne.s32.totalorder %s192, %s206
      %p208 = scmp.eq.s32.totalorder %s35, 0
      %p209 = por %p207, %p208
      %s211 = sadd.s32 %s210, 1
      %p214 = scmp.eq.s32.totalorder %s29, 1
      %p215 = scmp.ne.s32.totalorder %s210, %s212
      %p216 = scmp.eq.s32.totalorder %s29, 0
      %p217 = por %p215, %p216
      %p218 = scmp.ne.s32.totalorder %s210, %s212
      %p219 = scmp.eq.s32.totalorder %s34, 1
      %p220 = por %p218, %p219
      %p221 = scmp.ne.s32.totalorder %s212, %s213
      %p222 = scmp.eq.s32.totalorder %s34, 0
      %p223 = por %p221, %p222
      %p224 = scmp.ne.s32.totalorder %s212, %s213
      %p225 = scmp.eq.s32.totalorder %s35, 1
      %p226 = por %p224, %p225
      %p228 = scmp.ne.s32.totalorder %s213, %s227
      %p229 = scmp.eq.s32.totalorder %s35, 0
      %p230 = por %p228, %p229
      %s232 = sadd.s32 %s231, 1
      %p235 = scmp.eq.s32.totalorder %s29, 1
      %p236 = scmp.ne.s32.totalorder %s231, %s233
      %p237 = scmp.eq.s32.totalorder %s29, 0
      %p238 = por %p236, %p237
      %p239 = scmp.ne.s32.totalorder %s231, %s233
      %p240 = scmp.eq.s32.totalorder %s34, 1
      %p241 = por %p239, %p240
      %p242 = scmp.ne.s32.totalorder %s233, %s234
      %p243 = scmp.eq.s32.totalorder %s34, 0
      %p244 = por %p242, %p243
      %p245 = scmp.ne.s32.totalorder %s233, %s234
      %p246 = scmp.eq.s32.totalorder %s35, 1
      %p247 = por %p245, %p246
      %p249 = scmp.ne.s32.totalorder %s234, %s248
      %p250 = scmp.eq.s32.totalorder %s35, 0
      %p251 = por %p249, %p250
      %s253 = sadd.s32 %s252, 1
      %p256 = scmp.eq.s32.totalorder %s29, 1
      %p257 = scmp.ne.s32.totalorder %s252, %s254
      %p258 = scmp.eq.s32.totalorder %s29, 0
      %p259 = por %p257, %p258
      %p260 = scmp.ne.s32.totalorder %s252, %s254
      %p261 = scmp.eq.s32.totalorder %s34, 1
      %p262 = por %p260, %p261
      %p263 = scmp.ne.s32.totalorder %s254, %s255
      %p264 = scmp.eq.s32.totalorder %s34, 0
      %p265 = por %p263, %p264
      %p266 = scmp.ne.s32.totalorder %s254, %s255
      %p267 = scmp.eq.s32.totalorder %s35, 1
      %p268 = por %p266, %p267
      %p270 = scmp.ne.s32.totalorder %s255, %s269
      %p271 = scmp.eq.s32.totalorder %s35, 0
      %p272 = por %p270, %p271
      %s274 = sadd.s32 %s273, 1
      %p277 = scmp.eq.s32.totalorder %s29, 1
      %p278 = scmp.ne.s32.totalorder %s273, %s275
      %p279 = scmp.eq.s32.totalorder %s29, 0
      %p280 = por %p278, %p279
      %p281 = scmp.ne.s32.totalorder %s273, %s275
      %p282 = scmp.eq.s32.totalorder %s34, 1
      %p283 = por %p281, %p282
      %p284 = scmp.ne.s32.totalorder %s275, %s276
      %p285 = scmp.eq.s32.totalorder %s34, 0
      %p286 = por %p284, %p285
      %p287 = scmp.ne.s32.totalorder %s275, %s276
      %p288 = scmp.eq.s32.totalorder %s35, 1
      %p289 = por %p287, %p288
      %p291 = scmp.ne.s32.totalorder %s276, %s290
      %p292 = scmp.eq.s32.totalorder %s35, 0
      %p293 = por %p291, %p292
      %s295 = sadd.s32 %s294, 1
      %p298 = scmp.eq.s32.totalorder %s29, 1
      %p299 = scmp.ne.s32.totalorder %s294, %s296
      %p300 = scmp.eq.s32.totalorder %s29, 0
      %p301 = por %p299, %p300
      %p302 = scmp.ne.s32.totalorder %s294, %s296
      %p303 = scmp.eq.s32.totalorder %s34, 1
      %p304 = por %p302, %p303
      %p305 = scmp.ne.s32.totalorder %s296, %s297
      %p306 = scmp.eq.s32.totalorder %s34, 0
      %p307 = por %p305, %p306
      %p308 = scmp.ne.s32.totalorder %s296, %s297
      %p309 = scmp.eq.s32.totalorder %s35, 1
      %p310 = por %p308, %p309
      %p312 = scmp.ne.s32.totalorder %s297, %s311
      %p313 = scmp.eq.s32.totalorder %s35, 0
      %p314 = por %p312, %p313
      %s316 = sadd.s32 %s315, 1
      %p319 = scmp.eq.s32.totalorder %s29, 1
      %p320 = scmp.ne.s32.totalorder %s315, %s317
      %p321 = scmp.eq.s32.totalorder %s29, 0
      %p322 = por %p320, %p321
      %p323 = scmp.ne.s32.totalorder %s315, %s317
      %p324 = scmp.eq.s32.totalorder %s34, 1
      %p325 = por %p323, %p324
      %p326 = scmp.ne.s32.totalorder %s317, %s318
      %p327 = scmp.eq.s32.totalorder %s34, 0
      %p328 = por %p326, %p327
      %p329 = scmp.ne.s32.totalorder %s317, %s318
      %p330 = scmp.eq.s32.totalorder %s35, 1
      %p331 = por %p329, %p330
      %p333 = scmp.ne.s32.totalorder %s318, %s332
      %p334 = scmp.eq.s32.totalorder %s35, 0
      %p335 = por %p333, %p334
      %s337 = sadd.s32 %s336, 1
      %p340 = scmp.eq.s32.totalorder %s29, 1
      %p341 = scmp.ne.s32.totalorder %s336, %s338
      %p342 = scmp.eq.s32.totalorder %s29, 0
      %p343 = por %p341, %p342
      %p344 = scmp.ne.s32.totalorder %s336, %s338
      %p345 = scmp.eq.s32.totalorder %s34, 1
      %p346 = por %p344, %p345
      %p347 = scmp.ne.s32.totalorder %s338, %s339
      %p348 = scmp.eq.s32.totalorder %s34, 0
      %p349 = por %p347, %p348
      %p350 = scmp.ne.s32.totalorder %s338, %s339
      %p351 = scmp.eq.s32.totalorder %s35, 1
      %p352 = por %p350, %p351
      %p354 = scmp.ne.s32.totalorder %s339, %s353
      %p355 = scmp.eq.s32.totalorder %s35, 0
      %p356 = por %p354, %p355
      %s358 = sadd.s32 %s357, 1
      %p361 = scmp.eq.s32.totalorder %s29, 1
      %p362 = scmp.ne.s32.totalorder %s357, %s359
      %p363 = scmp.eq.s32.totalorder %s29, 0
      %p364 = por %p362, %p363
      %p365 = scmp.ne.s32.totalorder %s357, %s359
      %p366 = scmp.eq.s32.totalorder %s34, 1
      %p367 = por %p365, %p366
      %p368 = scmp.ne.s32.totalorder %s359, %s360
      %p369 = scmp.eq.s32.totalorder %s34, 0
      %p370 = por %p368, %p369
      %p371 = scmp.ne.s32.totalorder %s359, %s360
      %p372 = scmp.eq.s32.totalorder %s35, 1
      %p373 = por %p371, %p372
      %p375 = scmp.ne.s32.totalorder %s360, %s374
      %p376 = scmp.eq.s32.totalorder %s35, 0
      %p377 = por %p375, %p376
      %s379 = sadd.s32 %s378, 1
      %p382 = scmp.eq.s32.totalorder %s29, 1
      %p383 = scmp.ne.s32.totalorder %s378, %s380
      %p384 = scmp.eq.s32.totalorder %s29, 0
      %p385 = por %p383, %p384
      %p386 = scmp.ne.s32.totalorder %s378, %s380
      %p387 = scmp.eq.s32.totalorder %s34, 1
      %p388 = por %p386, %p387
      %p389 = scmp.ne.s32.totalorder %s380, %s381
      %p390 = scmp.eq.s32.totalorder %s34, 0
      %p391 = por %p389, %p390
      %p392 = scmp.ne.s32.totalorder %s380, %s381
      %p393 = scmp.eq.s32.totalorder %s35, 1
      %p394 = por %p392, %p393
      %p396 = scmp.ne.s32.totalorder %s381, %s395
      %p397 = scmp.eq.s32.totalorder %s35, 0
      %p398 = por %p396, %p397
      %s399 = ssub.s32 %s29, %s36
      %p400 = scmp.eq.s32.totalorder %s399, 0
      %s402 = sadd.s32 %s401, 1
      %s403 = scalar_select %p400, %s401, %s402
      %p406 = pneg %p400
      %p407 = scmp.eq.s32.totalorder %s29, 1
      %p408 = por %p406, %p407
      %p409 = scmp.ne.s32.totalorder %s401, %s404
      %p410 = scmp.eq.s32.totalorder %s29, 0
      %p411 = por %p409, %p410
      %p412 = scmp.ne.s32.totalorder %s401, %s404
      %p413 = scmp.eq.s32.totalorder %s34, 1
      %p414 = por %p412, %p413
      %p415 = scmp.ne.s32.totalorder %s404, %s405
      %p416 = scmp.eq.s32.totalorder %s34, 0
      %p417 = por %p415, %p416
      %p418 = scmp.ne.s32.totalorder %s404, %s405
      %p419 = scmp.eq.s32.totalorder %s35, 1
      %p420 = por %p418, %p419
      %p422 = scmp.ne.s32.totalorder %s405, %s421
      %p423 = scmp.eq.s32.totalorder %s35, 0
      %p424 = por %p422, %p423
      %p425 = scmp.le.s32.totalorder 1, %s29
      %p426 = scmp.lt.s32.totalorder %s29, 3
      %p427 = pnand %p425, %p426
      %p428 = pneg %p427
      // Predicated region
      $region9: #{forward.1} parent=5 // pred_check
        _
      $region10: #{forward.1} parent=5 // pred_check_branch
        %430 = sbr.rel (%p427) target = $region12
      $region11: #{forward.1} parent=5 // pred_region
        %s431 = ssub.s32 %s29, 1
        // Predicated region
        $region13: #{forward.1} parent=11 // pred_check
          %p432 = pneg %p76
        $region14: #{forward.1} parent=11 // pred_check_branch
          %434 = sbr.rel (%p432) target = $region16
        $region15: #{forward.1} parent=11 // pred_region
          _
        $region16: #{forward.1} parent=11 // pred_fallthru
          _
        // Predicated region
        $region17: #{forward.1} parent=11 // pred_check
          %p435 = pneg %p97
        $region18: #{forward.1} parent=11 // pred_check_branch
          %437 = sbr.rel (%p435) target = $region20
        $region19: #{forward.1} parent=11 // pred_region
          %439 = vsyncadd [#allocation3], 0
          %s440 = sshll.u32 %s2, 4
          %s441 = int_to_ptr.hbm [resolvable:$true] %s440
          %s442 = sshll.u32 [#allocation2], 4
          %s443 = int_to_ptr.vmem [resolvable:$true] %s442
          %448 = dma.hbm_to_vmem [thread:$0]  %s441, 3072, %s443, [#allocation3], 256, 256, 16
        $region20: #{forward.1} parent=11 // pred_fallthru
          _
        // Predicated region
        $region21: #{forward.1} parent=11 // pred_check
          %p449 = pneg %p118
        $region22: #{forward.1} parent=11 // pred_check_branch
          %451 = sbr.rel (%p449) target = $region24
        $region23: #{forward.1} parent=11 // pred_region
          _
        $region24: #{forward.1} parent=11 // pred_fallthru
          _
        // Predicated region
        $region25: #{forward.1} parent=11 // pred_check
          %p452 = pneg %p139
        $region26: #{forward.1} parent=11 // pred_check_branch
          %454 = sbr.rel (%p452) target = $region28
        $region27: #{forward.1} parent=11 // pred_region
          %456 = vsyncadd [#allocation6], 0
          %s457 = sshll.u32 %s4, 4
          %s458 = int_to_ptr.hbm [resolvable:$true] %s457
          %s459 = sshll.u32 [#allocation5], 4
          %s460 = int_to_ptr.vmem [resolvable:$true] %s459
          %465 = dma.hbm_to_vmem [thread:$0]  %s458, 2688, %s460, [#allocation6], 128, 128, 8
        $region28: #{forward.1} parent=11 // pred_fallthru
          _
        // Predicated region
        $region29: #{forward.1} parent=11 // pred_check
          %p466 = pneg %p160
        $region30: #{forward.1} parent=11 // pred_check_branch
          %468 = sbr.rel (%p466) target = $region32
        $region31: #{forward.1} parent=11 // pred_region
          _
        $region32: #{forward.1} parent=11 // pred_fallthru
          _
        // Predicated region
        $region33: #{forward.1} parent=11 // pred_check
          %p469 = pneg %p181
        $region34: #{forward.1} parent=11 // pred_check_branch
          %471 = sbr.rel (%p469) target = $region36
        $region35: #{forward.1} parent=11 // pred_region
          _
        $region36: #{forward.1} parent=11 // pred_fallthru
          _
        // Predicated region
        $region37: #{forward.1} parent=11 // pred_check
          %p472 = pneg %p202
        $region38: #{forward.1} parent=11 // pred_check_branch
          %474 = sbr.rel (%p472) target = $region40
        $region39: #{forward.1} parent=11 // pred_region
          %476 = vsyncadd [#allocation6], 0
          %s477 = sshll.u32 %s7, 4
          %s478 = int_to_ptr.hbm [resolvable:$true] %s477
          %s479 = sshll.u32 [#allocation7], 4
          %s480 = int_to_ptr.vmem [resolvable:$true] %s479
          %485 = dma.hbm_to_vmem [thread:$0]  %s478, 8448, %s480, [#allocation6], 256, 256, 16
        $region40: #{forward.1} parent=11 // pred_fallthru
          _
        // Predicated region
        $region41: #{forward.1} parent=11 // pred_check
          %p486 = pneg %p223
        $region42: #{forward.1} parent=11 // pred_check_branch
          %488 = sbr.rel (%p486) target = $region44
        $region43: #{forward.1} parent=11 // pred_region
          _
        $region44: #{forward.1} parent=11 // pred_fallthru
          _
        // Predicated region
        $region45: #{forward.1} parent=11 // pred_check
          %p489 = pneg %p244
        $region46: #{forward.1} parent=11 // pred_check_branch
          %491 = sbr.rel (%p489) target = $region48
        $region47: #{forward.1} parent=11 // pred_region
          _
        $region48: #{forward.1} parent=11 // pred_fallthru
          _
        // Predicated region
        $region49: #{forward.1} parent=11 // pred_check
          %p492 = pneg %p265
        $region50: #{forward.1} parent=11 // pred_check_branch
          %494 = sbr.rel (%p492) target = $region52
        $region51: #{forward.1} parent=11 // pred_region
          _
        $region52: #{forward.1} parent=11 // pred_fallthru
          _
        // Predicated region
        $region53: #{forward.1} parent=11 // pred_check
          %p495 = pneg %p286
        $region54: #{forward.1} parent=11 // pred_check_branch
          %497 = sbr.rel (%p495) target = $region56
        $region55: #{forward.1} parent=11 // pred_region
          %499 = vsyncadd [#allocation9], 0
          %s500 = sshll.u32 %s11, 4
          %s501 = int_to_ptr.hbm [resolvable:$true] %s500
          %s502 = sshll.u32 [#allocation8], 4
          %s503 = int_to_ptr.vmem [resolvable:$true] %s502
          %508 = dma.hbm_to_vmem [thread:$0]  %s501, 12544, %s503, [#allocation9], 128, 128, 8
        $region56: #{forward.1} parent=11 // pred_fallthru
          _
        // Predicated region
        $region57: #{forward.1} parent=11 // pred_check
          %p509 = pneg %p307
        $region58: #{forward.1} parent=11 // pred_check_branch
          %511 = sbr.rel (%p509) target = $region60
        $region59: #{forward.1} parent=11 // pred_region
          _
        $region60: #{forward.1} parent=11 // pred_fallthru
          _
        // Predicated region
        $region61: #{forward.1} parent=11 // pred_check
          %p512 = pneg %p328
        $region62: #{forward.1} parent=11 // pred_check_branch
          %514 = sbr.rel (%p512) target = $region64
        $region63: #{forward.1} parent=11 // pred_region
          _
        $region64: #{forward.1} parent=11 // pred_fallthru
          _
        // Predicated region
        $region65: #{forward.1} parent=11 // pred_check
          %p515 = pneg %p349
        $region66: #{forward.1} parent=11 // pred_check_branch
          %517 = sbr.rel (%p515) target = $region68
        $region67: #{forward.1} parent=11 // pred_region
          _
        $region68: #{forward.1} parent=11 // pred_fallthru
          _
        // Predicated region
        $region69: #{forward.1} parent=11 // pred_check
          %p518 = pneg %p370
        $region70: #{forward.1} parent=11 // pred_check_branch
          %520 = sbr.rel (%p518) target = $region72
        $region71: #{forward.1} parent=11 // pred_region
          _
        $region72: #{forward.1} parent=11 // pred_fallthru
          _
        // Predicated region
        $region73: #{forward.1} parent=11 // pred_check
          %p521 = pneg %p391
        $region74: #{forward.1} parent=11 // pred_check_branch
          %523 = sbr.rel (%p521) target = $region76
        $region75: #{forward.1} parent=11 // pred_region
          _
        $region76: #{forward.1} parent=11 // pred_fallthru
          _
      $region12: #{forward.1} parent=5 // pred_fallthru
        _
      %p524 = scmp.lt.s32.totalorder %s29, 2
      // Predicated region
      $region77: #{forward.1} parent=5 // pred_check
        %p525 = pneg %p524
      $region78: #{forward.1} parent=5 // pred_check_branch
        %527 = sbr.rel (%p525) target = $region80
      $region79: #{forward.1} parent=5 // pred_region
        // Predicated region
        $region81: #{forward.1} parent=79 // pred_check
          %p528 = pneg %p49
        $region82: #{forward.1} parent=79 // pred_check_branch
          %530 = sbr.rel (%p528) target = $region84
        $region83: #{forward.1} parent=79 // pred_region
          %p531 = scmp.lt.s32.totalorder %s29, 1
          %s532 = scalar_select %p531, %s29, 1
          %s533 = smul.addr %s532, 4
          %s534 = smul.addr %s533, 8
          %s535 = scalar_lea.vmem %s0, %s534
        $region84: #{forward.1} parent=79 // pred_fallthru
          _
      $region80: #{forward.1} parent=5 // pred_fallthru
        _
      %p536 = scmp.le.s32.totalorder 1, %s29
      %p537 = scmp.lt.s32.totalorder %s29, 3
      %p538 = pnand %p536, %p537
      %p539 = pneg %p538
      // Predicated region
      $region85: #{forward.1} parent=5 // pred_check
        _
      $region86: #{forward.1} parent=5 // pred_check_branch
        %541 = sbr.rel (%p538) target = $region88
      $region87: #{forward.1} parent=5 // pred_region
        %s542 = ssub.s32 %s29, 1
        // Predicated region
        $region89: #{forward.1} parent=87 // pred_check
          %p543 = pneg %p97
        $region90: #{forward.1} parent=87 // pred_check_branch
          %545 = sbr.rel (%p543) target = $region92
        $region91: #{forward.1} parent=87 // pred_region
          %547 = dma.done [#allocation3], 3072
        $region92: #{forward.1} parent=87 // pred_fallthru
          _
        // Predicated region
        $region93: #{forward.1} parent=87 // pred_check
          %p548 = pneg %p139
        $region94: #{forward.1} parent=87 // pred_check_branch
          %550 = sbr.rel (%p548) target = $region96
        $region95: #{forward.1} parent=87 // pred_region
          %552 = dma.done [#allocation6], 2688
        $region96: #{forward.1} parent=87 // pred_fallthru
          _
        // Predicated region
        $region97: #{forward.1} parent=87 // pred_check
          %p553 = pneg %p202
        $region98: #{forward.1} parent=87 // pred_check_branch
          %555 = sbr.rel (%p553) target = $region100
        $region99: #{forward.1} parent=87 // pred_region
          %557 = dma.done [#allocation6], 8448
        $region100: #{forward.1} parent=87 // pred_fallthru
          _
        // Predicated region
        $region101: #{forward.1} parent=87 // pred_check
          %p558 = pneg %p286
        $region102: #{forward.1} parent=87 // pred_check_branch
          %560 = sbr.rel (%p558) target = $region104
        $region103: #{forward.1} parent=87 // pred_region
          %562 = dma.done [#allocation9], 12544
        $region104: #{forward.1} parent=87 // pred_fallthru
          _
        %p563 = scmp.lt.s32.totalorder %s34, 1
        %s564 = scalar_select %p563, %s34, 1
        %s565 = smul.addr %s564, 4
        %s566 = smul.addr %s565, 8
        %s567 = scalar_lea.vmem %s0, %s566
        %p568 = pneg %p55
        %p569 = pneg %p52
        %p570 = pneg %p76
        %p571 = pneg %p73
        %p572 = pneg %p97
        %p573 = pneg %p94
        %p574 = pneg %p118
        %p575 = pneg %p115
        %p576 = pneg %p139
        %p577 = pneg %p136
        %p578 = pneg %p160
        %p579 = pneg %p157
        %p580 = pneg %p181
        %p581 = pneg %p178
        %p582 = pneg %p202
        %p583 = pneg %p199
        %p584 = pneg %p223
        %p585 = pneg %p220
        %p586 = pneg %p244
        %p587 = pneg %p241
        %p588 = pneg %p265
        %p589 = pneg %p262
        %p590 = pneg %p286
        %p591 = pneg %p283
        %p592 = pneg %p307
        %p593 = pneg %p304
        %p594 = pneg %p328
        %p595 = pneg %p325
        %p596 = pneg %p349
        %p597 = pneg %p346
        %p598 = pneg %p370
        %p599 = pneg %p367
        %p600 = pneg %p391
        %p601 = pneg %p388
        %p602 = pneg %p417
        %p603 = pneg %p414
        %s604 = sand.u32 %s404, 1
        %s605 = scalar_lea.sflag [#allocation4], %s604
        %s606 = sand.u32 %s404, 1
        %s607 = scalar_lea.vmem [#allocation10], %s606
        %p608 = scmp.lt.s32.totalorder %s34, 1
        %s609 = scalar_select %p608, %s34, 1
        %s610 = smul.addr %s609, 4
        %s611 = smul.addr %s610, 8
        %s612 = scalar_lea.vmem %s0, %s611
        %v613 = vld [vmem:[%s612] sm:$0xff]
        %v614 = vld [vmem:[%s612 + $0x8] sm:$0xff]
        %v615 = vld [vmem:[%s612 + $0x10] sm:$0xff]
        %v616 = vld [vmem:[%s612 + $0x18] sm:$0xf]
        %v617 = vld [vmem:[%s1] sm:$0xff]
        %v618 = vld [vmem:[%s1 + $0x8] sm:$0xff]
        %v619 = vld [vmem:[%s1 + $0x10] sm:$0xff]
        %v620 = vld [vmem:[%s1 + $0x18] sm:$0xf]
        %vm621 = vcmask 228352
        %v623 = vsel %vm621, %v617, 0
        %v626 = vsel %vm621, %v618, 0
        %v629 = vsel %vm621, %v619, 0
        %v632 = vsel %vm621, %v620, 0
        %vm634 = vcmask 1043456
        %v636 = vsel %vm634, %v616, 0
        %638 = vmatpush.msra.mxu0 0.0
        %639 = vmatpush.msra.mxu0 0.0
        %640 = vmatpush.msra.mxu0 0.0
        %641 = vmatpush.msra.mxu0 0.0
        %642 = vmatpush.msra.mxu0 0.0
        %643 = vmatpush.msra.mxu0 0.0
        %644 = vmatpush.msra.mxu0 0.0
        %645 = vmatpush.msra.mxu0 0.0
        %646 = vmatpush.msra.mxu0 0.0
        %647 = vmatpush.msra.mxu0 0.0
        %648 = vmatpush.msra.mxu0 0.0
        %649 = vmatpush.msra.mxu0 0.0
        %650 = vmatpush.msra.mxu0 %v636
        %651 = vmatpush.msra.mxu0 %v615
        %652 = vmatpush.msra.mxu0 %v614
        %653 = vmatpush.msra.mxu0 %v613
        %654 = vmatmul.f32.gmra.mxu0 %v623
        %v655 = vpop.f32.mrf.mxu0
        %v656 = vadd.f32 0.0, %v655
        %657 = vmatmul.f32.gmra.mxu0 %v626
        %v658 = vpop.f32.mrf.mxu0
        %v659 = vadd.f32 0.0, %v658
        %660 = vmatmul.f32.gmra.mxu0 %v629
        %v661 = vpop.f32.mrf.mxu0
        %v662 = vadd.f32 0.0, %v661
        %663 = vmatmul.f32.gmra.mxu0 %v632
        %v664 = vpop.f32.mrf.mxu0
        %v665 = vadd.f32 0.0, %v664
        %666 = vdwg.mxu0
        %v667 = vld [vmem:[#allocation2] sm:$0xff]
        %v668 = vld [vmem:[#allocation2 + $0x8] sm:$0xff]
        %v669 = vld [vmem:[#allocation2 + $0x10] sm:$0xff]
        %v670 = vld [vmem:[#allocation2 + $0x18] sm:$0xff]
        %v671 = vld [vmem:[#allocation2 + $0x20] sm:$0xff]
        %v672 = vld [vmem:[#allocation2 + $0x28] sm:$0xff]
        %v673 = vld [vmem:[#allocation2 + $0x30] sm:$0xf]
        %v674 = vld [vmem:[#allocation2 + $0x38] sm:$0xf]
        %s675 = scalar_lea.vmem %s1, 32
        %v676 = vld [vmem:[%s675] sm:$0xff]
        %v677 = vld [vmem:[%s675 + $0x8] sm:$0xff]
        %v678 = vld [vmem:[%s675 + $0x10] sm:$0xff]
        %v679 = vld [vmem:[%s675 + $0x18] sm:$0xf]
        %v681 = vsel %vm621, %v676, 0
        %v684 = vsel %vm621, %v677, 0
        %v687 = vsel %vm621, %v678, 0
        %v690 = vsel %vm621, %v679, 0
        %692 = vmatpush.msra.mxu0 0.0
        %693 = vmatpush.msra.mxu0 0.0
        %694 = vmatpush.msra.mxu0 0.0
        %695 = vmatpush.msra.mxu0 0.0
        %696 = vmatpush.msra.mxu0 0.0
        %697 = vmatpush.msra.mxu0 0.0
        %698 = vmatpush.msra.mxu0 0.0
        %699 = vmatpush.msra.mxu0 0.0
        %700 = vmatpush.msra.mxu0 0.0
        %701 = vmatpush.msra.mxu0 0.0
        %702 = vmatpush.msra.mxu0 0.0
        %703 = vmatpush.msra.mxu0 0.0
        %704 = vmatpush.msra.mxu0 %v636
        %705 = vmatpush.msra.mxu0 %v615
        %706 = vmatpush.msra.mxu0 %v614
        %707 = vmatpush.msra.mxu0 %v613
        %708 = vmatmul.f32.gmra.mxu0 %v681
        %v709 = vpop.f32.mrf.mxu0
        %v710 = vadd.f32 0.0, %v709
        %711 = vmatmul.f32.gmra.mxu0 %v684
        %v712 = vpop.f32.mrf.mxu0
        %v713 = vadd.f32 0.0, %v712
        %714 = vmatmul.f32.gmra.mxu0 %v687
        %v715 = vpop.f32.mrf.mxu0
        %v716 = vadd.f32 0.0, %v715
        %717 = vmatmul.f32.gmra.mxu0 %v690
        %v718 = vpop.f32.mrf.mxu0
        %v719 = vadd.f32 0.0, %v718
        %720 = vdwg.mxu0
        %s721 = scalar_lea.vmem [#allocation2], 64
        %v722 = vld [vmem:[%s721] sm:$0xff]
        %v723 = vld [vmem:[%s721 + $0x8] sm:$0xff]
        %v724 = vld [vmem:[%s721 + $0x10] sm:$0xff]
        %v725 = vld [vmem:[%s721 + $0x18] sm:$0xff]
        %v726 = vld [vmem:[%s721 + $0x20] sm:$0xff]
        %v727 = vld [vmem:[%s721 + $0x28] sm:$0xff]
        %v728 = vld [vmem:[%s721 + $0x30] sm:$0xf]
        %v729 = vld [vmem:[%s721 + $0x38] sm:$0xf]
        %v731 = vsel %vm621, %v710, 0
        %v734 = vsel %vm621, %v713, 0
        %v737 = vsel %vm621, %v716, 0
        %v740 = vsel %vm621, %v719, 0
        %v743 = vsel %vm634, %v728, 0
        %v746 = vsel %vm634, %v729, 0
        %748 = vmatpush.msra.mxu0 0.0
        %749 = vmatpush.msra.mxu0 0.0
        %750 = vmatpush.msra.mxu0 0.0
        %751 = vmatpush.msra.mxu0 0.0
        %752 = vmatpush.msra.mxu0 0.0
        %753 = vmatpush.msra.mxu0 0.0
        %754 = vmatpush.msra.mxu0 0.0
        %755 = vmatpush.msra.mxu0 0.0
        %756 = vmatpush.msra.mxu0 0.0
        %757 = vmatpush.msra.mxu0 0.0
        %758 = vmatpush.msra.mxu0 0.0
        %759 = vmatpush.msra.mxu0 0.0
        %760 = vmatpush.msra.mxu0 %v743
        %761 = vmatpush.msra.mxu0 %v726
        %762 = vmatpush.msra.mxu0 %v724
        %763 = vmatpush.msra.mxu0 %v722
        %764 = vmatmul.f32.gmra.mxu0 %v731
        %v765 = vpop.f32.mrf.mxu0
        %v766 = vadd.f32 0.0, %v765
        %767 = vmatmul.f32.gmra.mxu0 %v734
        %v768 = vpop.f32.mrf.mxu0
        %v769 = vadd.f32 0.0, %v768
        %770 = vmatmul.f32.gmra.mxu0 %v737
        %v771 = vpop.f32.mrf.mxu0
        %v772 = vadd.f32 0.0, %v771
        %773 = vmatmul.f32.gmra.mxu0 %v740
        %v774 = vpop.f32.mrf.mxu0
        %v775 = vadd.f32 0.0, %v774
        %776 = vdwg.mxu0
        %777 = vmatpush.msra.mxu0 0.0
        %778 = vmatpush.msra.mxu0 0.0
        %779 = vmatpush.msra.mxu0 0.0
        %780 = vmatpush.msra.mxu0 0.0
        %781 = vmatpush.msra.mxu0 0.0
        %782 = vmatpush.msra.mxu0 0.0
        %783 = vmatpush.msra.mxu0 0.0
        %784 = vmatpush.msra.mxu0 0.0
        %785 = vmatpush.msra.mxu0 0.0
        %786 = vmatpush.msra.mxu0 0.0
        %787 = vmatpush.msra.mxu0 0.0
        %788 = vmatpush.msra.mxu0 0.0
        %789 = vmatpush.msra.mxu0 %v746
        %790 = vmatpush.msra.mxu0 %v727
        %791 = vmatpush.msra.mxu0 %v725
        %792 = vmatpush.msra.mxu0 %v723
        %793 = vmatmul.f32.gmra.mxu0 %v731
        %v794 = vpop.f32.mrf.mxu0
        %v795 = vadd.f32 0.0, %v794
        %796 = vmatmul.f32.gmra.mxu0 %v734
        %v797 = vpop.f32.mrf.mxu0
        %v798 = vadd.f32 0.0, %v797
        %799 = vmatmul.f32.gmra.mxu0 %v737
        %v800 = vpop.f32.mrf.mxu0
        %v801 = vadd.f32 0.0, %v800
        %802 = vmatmul.f32.gmra.mxu0 %v740
        %v803 = vpop.f32.mrf.mxu0
        %v804 = vadd.f32 0.0, %v803
        %805 = vdwg.mxu0
        %v807 = vsel %vm621, %v656, 0
        %v810 = vsel %vm621, %v659, 0
        %v813 = vsel %vm621, %v662, 0
        %v816 = vsel %vm621, %v665, 0
        %v819 = vsel %vm634, %v673, 0
        %v822 = vsel %vm634, %v674, 0
        %824 = vmatpush.msra.mxu0 0.0
        %825 = vmatpush.msra.mxu0 0.0
        %826 = vmatpush.msra.mxu0 0.0
        %827 = vmatpush.msra.mxu0 0.0
        %828 = vmatpush.msra.mxu0 0.0
        %829 = vmatpush.msra.mxu0 0.0
        %830 = vmatpush.msra.mxu0 0.0
        %831 = vmatpush.msra.mxu0 0.0
        %832 = vmatpush.msra.mxu0 0.0
        %833 = vmatpush.msra.mxu0 0.0
        %834 = vmatpush.msra.mxu0 0.0
        %835 = vmatpush.msra.mxu0 0.0
        %836 = vmatpush.msra.mxu0 %v819
        %837 = vmatpush.msra.mxu0 %v671
        %838 = vmatpush.msra.mxu0 %v669
        %839 = vmatpush.msra.mxu0 %v667
        %840 = vmatmul.f32.gmra.mxu0 %v807
        %v841 = vpop.f32.mrf.mxu0
        %v842 = vadd.f32 %v766, %v841
        %843 = vmatmul.f32.gmra.mxu0 %v810
        %v844 = vpop.f32.mrf.mxu0
        %v845 = vadd.f32 %v769, %v844
        %846 = vmatmul.f32.gmra.mxu0 %v813
        %v847 = vpop.f32.mrf.mxu0
        %v848 = vadd.f32 %v772, %v847
        %849 = vmatmul.f32.gmra.mxu0 %v816
        %v850 = vpop.f32.mrf.mxu0
        %v851 = vadd.f32 %v775, %v850
        %852 = vdwg.mxu0
        %853 = vmatpush.msra.mxu0 0.0
        %854 = vmatpush.msra.mxu0 0.0
        %855 = vmatpush.msra.mxu0 0.0
        %856 = vmatpush.msra.mxu0 0.0
        %857 = vmatpush.msra.mxu0 0.0
        %858 = vmatpush.msra.mxu0 0.0
        %859 = vmatpush.msra.mxu0 0.0
        %860 = vmatpush.msra.mxu0 0.0
        %861 = vmatpush.msra.mxu0 0.0
        %862 = vmatpush.msra.mxu0 0.0
        %863 = vmatpush.msra.mxu0 0.0
        %864 = vmatpush.msra.mxu0 0.0
        %865 = vmatpush.msra.mxu0 %v822
        %866 = vmatpush.msra.mxu0 %v672
        %867 = vmatpush.msra.mxu0 %v670
        %868 = vmatpush.msra.mxu0 %v668
        %869 = vmatmul.f32.gmra.mxu0 %v807
        %v870 = vpop.f32.mrf.mxu0
        %v871 = vadd.f32 %v795, %v870
        %872 = vmatmul.f32.gmra.mxu0 %v810
        %v873 = vpop.f32.mrf.mxu0
        %v874 = vadd.f32 %v798, %v873
        %875 = vmatmul.f32.gmra.mxu0 %v813
        %v876 = vpop.f32.mrf.mxu0
        %v877 = vadd.f32 %v801, %v876
        %878 = vmatmul.f32.gmra.mxu0 %v816
        %v879 = vpop.f32.mrf.mxu0
        %v880 = vadd.f32 %v804, %v879
        %881 = vdwg.mxu0
        %s882 = scalar_lea.vmem %s1, 64
        %v883 = vld [vmem:[%s882] sm:$0xff]
        %v884 = vld [vmem:[%s882 + $0x8] sm:$0xff]
        %v885 = vld [vmem:[%s882 + $0x10] sm:$0xff]
        %v886 = vld [vmem:[%s882 + $0x18] sm:$0xf]
        %v888 = vsel %vm621, %v883, 0
        %v891 = vsel %vm621, %v884, 0
        %v894 = vsel %vm621, %v885, 0
        %v897 = vsel %vm621, %v886, 0
        %899 = vmatpush.msra.mxu0 0.0
        %900 = vmatpush.msra.mxu0 0.0
        %901 = vmatpush.msra.mxu0 0.0
        %902 = vmatpush.msra.mxu0 0.0
        %903 = vmatpush.msra.mxu0 0.0
        %904 = vmatpush.msra.mxu0 0.0
        %905 = vmatpush.msra.mxu0 0.0
        %906 = vmatpush.msra.mxu0 0.0
        %907 = vmatpush.msra.mxu0 0.0
        %908 = vmatpush.msra.mxu0 0.0
        %909 = vmatpush.msra.mxu0 0.0
        %910 = vmatpush.msra.mxu0 0.0
        %911 = vmatpush.msra.mxu0 %v636
        %912 = vmatpush.msra.mxu0 %v615
        %913 = vmatpush.msra.mxu0 %v614
        %914 = vmatpush.msra.mxu0 %v613
        %915 = vmatmul.f32.gmra.mxu0 %v888
        %v916 = vpop.f32.mrf.mxu0
        %v917 = vadd.f32 0.0, %v916
        %918 = vmatmul.f32.gmra.mxu0 %v891
        %v919 = vpop.f32.mrf.mxu0
        %v920 = vadd.f32 0.0, %v919
        %921 = vmatmul.f32.gmra.mxu0 %v894
        %v922 = vpop.f32.mrf.mxu0
        %v923 = vadd.f32 0.0, %v922
        %924 = vmatmul.f32.gmra.mxu0 %v897
        %v925 = vpop.f32.mrf.mxu0
        %v926 = vadd.f32 0.0, %v925
        %927 = vdwg.mxu0
        %s928 = scalar_lea.vmem [#allocation2], 128
        %v929 = vld [vmem:[%s928] sm:$0xff]
        %v930 = vld [vmem:[%s928 + $0x8] sm:$0xff]
        %v931 = vld [vmem:[%s928 + $0x10] sm:$0xff]
        %v932 = vld [vmem:[%s928 + $0x18] sm:$0xff]
        %v933 = vld [vmem:[%s928 + $0x20] sm:$0xff]
        %v934 = vld [vmem:[%s928 + $0x28] sm:$0xff]
        %v935 = vld [vmem:[%s928 + $0x30] sm:$0xf]
        %v936 = vld [vmem:[%s928 + $0x38] sm:$0xf]
        %v938 = vsel %vm621, %v917, 0
        %v941 = vsel %vm621, %v920, 0
        %v944 = vsel %vm621, %v923, 0
        %v947 = vsel %vm621, %v926, 0
        %v950 = vsel %vm634, %v935, 0
        %v953 = vsel %vm634, %v936, 0
        %955 = vmatpush.msra.mxu0 0.0
        %956 = vmatpush.msra.mxu0 0.0
        %957 = vmatpush.msra.mxu0 0.0
        %958 = vmatpush.msra.mxu0 0.0
        %959 = vmatpush.msra.mxu0 0.0
        %960 = vmatpush.msra.mxu0 0.0
        %961 = vmatpush.msra.mxu0 0.0
        %962 = vmatpush.msra.mxu0 0.0
        %963 = vmatpush.msra.mxu0 0.0
        %964 = vmatpush.msra.mxu0 0.0
        %965 = vmatpush.msra.mxu0 0.0
        %966 = vmatpush.msra.mxu0 0.0
        %967 = vmatpush.msra.mxu0 %v950
        %968 = vmatpush.msra.mxu0 %v933
        %969 = vmatpush.msra.mxu0 %v931
        %970 = vmatpush.msra.mxu0 %v929
        %971 = vmatmul.f32.gmra.mxu0 %v938
        %v972 = vpop.f32.mrf.mxu0
        %v973 = vadd.f32 0.0, %v972
        %974 = vmatmul.f32.gmra.mxu0 %v941
        %v975 = vpop.f32.mrf.mxu0
        %v976 = vadd.f32 0.0, %v975
        %977 = vmatmul.f32.gmra.mxu0 %v944
        %v978 = vpop.f32.mrf.mxu0
        %v979 = vadd.f32 0.0, %v978
        %980 = vmatmul.f32.gmra.mxu0 %v947
        %v981 = vpop.f32.mrf.mxu0
        %v982 = vadd.f32 0.0, %v981
        %983 = vdwg.mxu0
        %984 = vmatpush.msra.mxu0 0.0
        %985 = vmatpush.msra.mxu0 0.0
        %986 = vmatpush.msra.mxu0 0.0
        %987 = vmatpush.msra.mxu0 0.0
        %988 = vmatpush.msra.mxu0 0.0
        %989 = vmatpush.msra.mxu0 0.0
        %990 = vmatpush.msra.mxu0 0.0
        %991 = vmatpush.msra.mxu0 0.0
        %992 = vmatpush.msra.mxu0 0.0
        %993 = vmatpush.msra.mxu0 0.0
        %994 = vmatpush.msra.mxu0 0.0
        %995 = vmatpush.msra.mxu0 0.0
        %996 = vmatpush.msra.mxu0 %v953
        %997 = vmatpush.msra.mxu0 %v934
        %998 = vmatpush.msra.mxu0 %v932
        %999 = vmatpush.msra.mxu0 %v930
        %1000 = vmatmul.f32.gmra.mxu0 %v938
        %v1001 = vpop.f32.mrf.mxu0
        %v1002 = vadd.f32 0.0, %v1001
        %1003 = vmatmul.f32.gmra.mxu0 %v941
        %v1004 = vpop.f32.mrf.mxu0
        %v1005 = vadd.f32 0.0, %v1004
        %1006 = vmatmul.f32.gmra.mxu0 %v944
        %v1007 = vpop.f32.mrf.mxu0
        %v1008 = vadd.f32 0.0, %v1007
        %1009 = vmatmul.f32.gmra.mxu0 %v947
        %v1010 = vpop.f32.mrf.mxu0
        %v1011 = vadd.f32 0.0, %v1010
        %1012 = vdwg.mxu0
        %v1013 = vadd.f32 %v842, %v973
        %v1014 = vadd.f32 %v871, %v1002
        %v1015 = vadd.f32 %v845, %v976
        %v1016 = vadd.f32 %v874, %v1005
        %v1017 = vadd.f32 %v848, %v979
        %v1018 = vadd.f32 %v877, %v1008
        %v1019 = vadd.f32 %v851, %v982
        %v1020 = vadd.f32 %v880, %v1011
        %v1021 = vld [vmem:[%s3] sm:$0x3]
        %v1023 = vperm.slane %v1021, 0
        %v1024 = vperm.slane %v1021, 1
        %v1027 = vadd.f32 %v1013, %v1023
        %v1028 = vadd.f32 %v1014, %v1024
        %v1029 = vadd.f32 %v1015, %v1023
        %v1030 = vadd.f32 %v1016, %v1024
        %v1031 = vadd.f32 %v1017, %v1023
        %v1032 = vadd.f32 %v1018, %v1024
        %v1033 = vadd.f32 %v1019, %v1023
        %v1034 = vadd.f32 %v1020, %v1024
        %v1035 = vmax.f32 %v1027, 0.0
        %v1036 = vmax.f32 %v1028, 0.0
        %v1037 = vmax.f32 %v1029, 0.0
        %v1038 = vmax.f32 %v1030, 0.0
        %v1039 = vmax.f32 %v1031, 0.0
        %v1040 = vmax.f32 %v1032, 0.0
        %v1041 = vmax.f32 %v1033, 0.0
        %v1042 = vmax.f32 %v1034, 0.0
        %1051 = vrot.lane.b32.xlu0 %v1035, 122
        %v1052 = vpop.permute.xlu0 %1051
        %1053 = vrot.lane.b32.xlu0 %v1036, 122
        %v1054 = vpop.permute.xlu0 %1053
        %1055 = vrot.lane.b32.xlu0 %v1037, 122
        %v1056 = vpop.permute.xlu0 %1055
        %1057 = vrot.lane.b32.xlu0 %v1038, 122
        %v1058 = vpop.permute.xlu0 %1057
        %1059 = vrot.lane.b32.xlu0 %v1039, 122
        %v1060 = vpop.permute.xlu0 %1059
        %1061 = vrot.lane.b32.xlu0 %v1040, 122
        %v1062 = vpop.permute.xlu0 %1061
        %1063 = vrot.lane.b32.xlu0 %v1041, 122
        %v1064 = vpop.permute.xlu0 %1063
        %1065 = vrot.lane.b32.xlu0 %v1042, 122
        %v1066 = vpop.permute.xlu0 %1065
        %vm1067 = vcmask 998400
        %v1068 = vsel %vm1067, %v1052, %v1054
        %v1069 = vsel %vm1067, %v1056, %v1058
        %v1070 = vsel %vm1067, %v1060, %v1062
        %v1071 = vsel %vm1067, %v1064, %v1066
        %v1080 = vmax.f32 %v1035, %v1068
        %v1081 = vmax.f32 %v1036, %v1054
        %v1082 = vmax.f32 %v1037, %v1069
        %v1083 = vmax.f32 %v1038, %v1058
        %v1084 = vmax.f32 %v1039, %v1070
        %v1085 = vmax.f32 %v1040, %v1062
        %v1086 = vmax.f32 %v1041, %v1071
        %v1087 = vmax.f32 %v1042, %v1066
        %v1088 = vld [vmem:[#allocation5] sm:$0xff]
        %v1089 = vld [vmem:[#allocation5 + $0x8] sm:$0xff]
        %v1090 = vld [vmem:[#allocation5 + $0x10] sm:$0xff]
        %v1091 = vld [vmem:[#allocation5 + $0x18] sm:$0xff]
        %v1092 = vld [vmem:[#allocation5 + $0x20] sm:$0xff]
        %v1093 = vld [vmem:[#allocation5 + $0x28] sm:$0xff]
        %v1094 = vld [vmem:[#allocation5 + $0x30] sm:$0xff]
        %v1095 = vld [vmem:[#allocation5 + $0x38] sm:$0xff]
        %v1096 = vld [vmem:[#allocation5 + $0x40] sm:$0xff]
        %v1097 = vld [vmem:[#allocation5 + $0x48] sm:$0xff]
        %v1098 = vld [vmem:[#allocation5 + $0x50] sm:$0xff]
        %v1099 = vld [vmem:[#allocation5 + $0x58] sm:$0xff]
        %v1100 = vld [vmem:[#allocation5 + $0x60] sm:$0xff]
        %v1101 = vld [vmem:[#allocation5 + $0x68] sm:$0xff]
        %v1102 = vld [vmem:[#allocation5 + $0x70] sm:$0xff]
        %v1103 = vld [vmem:[#allocation5 + $0x78] sm:$0xff]
        %v1104 = vld [vmem:[#allocation5 + $0x80] sm:$0xff]
        %v1105 = vld [vmem:[#allocation5 + $0x88] sm:$0xff]
        %v1106 = vld [vmem:[#allocation5 + $0x90] sm:$0xff]
        %v1107 = vld [vmem:[#allocation5 + $0x98] sm:$0xff]
        %v1108 = vld [vmem:[#allocation5 + $0xa0] sm:$0x3]
        %vm1109 = vcmask 277504
        %v1111 = vsel %vm1109, %v1081, 0
        %v1114 = vsel %vm1109, %v1083, 0
        %v1117 = vsel %vm1109, %v1085, 0
        %v1120 = vsel %vm1109, %v1087, 0
        %vm1122 = vcmask 1041408
        %v1124 = vsel %vm1122, %v1108, 0
        %1126 = vmatpush.msra.mxu0 %v1103
        %1127 = vmatpush.msra.mxu0 %v1102
        %1128 = vmatpush.msra.mxu0 %v1101
        %1129 = vmatpush.msra.mxu0 %v1100
        %1130 = vmatpush.msra.mxu0 %v1099
        %1131 = vmatpush.msra.mxu0 %v1098
        %1132 = vmatpush.msra.mxu0 %v1097
        %1133 = vmatpush.msra.mxu0 %v1096
        %1134 = vmatpush.msra.mxu0 %v1095
        %1135 = vmatpush.msra.mxu0 %v1094
        %1136 = vmatpush.msra.mxu0 %v1093
        %1137 = vmatpush.msra.mxu0 %v1092
        %1138 = vmatpush.msra.mxu0 %v1091
        %1139 = vmatpush.msra.mxu0 %v1090
        %1140 = vmatpush.msra.mxu0 %v1089
        %1141 = vmatpush.msra.mxu0 %v1088
        %1142 = vmatmul.f32.gmra.mxu0 %v1080
        %v1143 = vpop.f32.mrf.mxu0
        %v1144 = vadd.f32 0.0, %v1143
        %1145 = vmatmul.f32.gmra.mxu0 %v1082
        %v1146 = vpop.f32.mrf.mxu0
        %v1147 = vadd.f32 0.0, %v1146
        %1148 = vmatmul.f32.gmra.mxu0 %v1084
        %v1149 = vpop.f32.mrf.mxu0
        %v1150 = vadd.f32 0.0, %v1149
        %1151 = vmatmul.f32.gmra.mxu0 %v1086
        %v1152 = vpop.f32.mrf.mxu0
        %v1153 = vadd.f32 0.0, %v1152
        %1154 = vdwg.mxu0
        %1155 = vmatpush.msra.mxu0 0.0
        %1156 = vmatpush.msra.mxu0 0.0
        %1157 = vmatpush.msra.mxu0 0.0
        %1158 = vmatpush.msra.mxu0 0.0
        %1159 = vmatpush.msra.mxu0 0.0
        %1160 = vmatpush.msra.mxu0 0.0
        %1161 = vmatpush.msra.mxu0 0.0
        %1162 = vmatpush.msra.mxu0 0.0
        %1163 = vmatpush.msra.mxu0 0.0
        %1164 = vmatpush.msra.mxu0 0.0
        %1165 = vmatpush.msra.mxu0 0.0
        %1166 = vmatpush.msra.mxu0 %v1124
        %1167 = vmatpush.msra.mxu0 %v1107
        %1168 = vmatpush.msra.mxu0 %v1106
        %1169 = vmatpush.msra.mxu0 %v1105
        %1170 = vmatpush.msra.mxu0 %v1104
        %1171 = vmatmul.f32.gmra.mxu0 %v1111
        %v1172 = vpop.f32.mrf.mxu0
        %v1173 = vadd.f32 %v1144, %v1172
        %1174 = vmatmul.f32.gmra.mxu0 %v1114
        %v1175 = vpop.f32.mrf.mxu0
        %v1176 = vadd.f32 %v1147, %v1175
        %1177 = vmatmul.f32.gmra.mxu0 %v1117
        %v1178 = vpop.f32.mrf.mxu0
        %v1179 = vadd.f32 %v1150, %v1178
        %1180 = vmatmul.f32.gmra.mxu0 %v1120
        %v1181 = vpop.f32.mrf.mxu0
        %v1182 = vadd.f32 %v1153, %v1181
        %1183 = vdwg.mxu0
        %vm1188 = vcmask 1046528
        %v1189 = vrot.slane %v1173, 1
        %v1190 = vrot.slane %v1176, 1
        %v1191 = vsel %vm1188, %v1189, %v1190
        %v1192 = vrot.slane %v1179, 1
        %v1193 = vsel %vm1188, %v1190, %v1192
        %v1194 = vrot.slane %v1182, 1
        %v1195 = vsel %vm1188, %v1192, %v1194
        %v1200 = vmax.f32 %v1173, %v1191
        %v1201 = vmax.f32 %v1176, %v1193
        %v1202 = vmax.f32 %v1179, %v1195
        %v1203 = vmax.f32 %v1182, %v1194
        %v1204 = vld [vmem:[%s5] sm:$0xff]
        %v1205 = vld [vmem:[%s5 + $0x8] sm:$0x3f]
        %vm1206 = vcmask 220160
        %v1208 = vsel %vm1206, %v1204, 0
        %v1211 = vsel %vm1206, %v1205, 0
        %vm1213 = vcmask 1042432
        %v1215 = vsel %vm1213, %v1203, 0
        %1217 = vmatpush.msra.mxu0 0.0
        %1218 = vmatpush.msra.mxu0 0.0
        %1219 = vmatpush.msra.mxu0 0.0
        %1220 = vmatpush.msra.mxu0 0.0
        %1221 = vmatpush.msra.mxu0 0.0
        %1222 = vmatpush.msra.mxu0 0.0
        %1223 = vmatpush.msra.mxu0 0.0
        %1224 = vmatpush.msra.mxu0 0.0
        %1225 = vmatpush.msra.mxu0 0.0
        %1226 = vmatpush.msra.mxu0 0.0
        %1227 = vmatpush.msra.mxu0 0.0
        %1228 = vmatpush.msra.mxu0 0.0
        %1229 = vmatpush.msra.mxu0 %v1215
        %1230 = vmatpush.msra.mxu0 %v1202
        %1231 = vmatpush.msra.mxu0 %v1201
        %1232 = vmatpush.msra.mxu0 %v1200
        %1233 = vmatmul.f32.gmra.mxu0 %v1208
        %v1234 = vpop.f32.mrf.mxu0
        %v1235 = vadd.f32 0.0, %v1234
        %1236 = vmatmul.f32.gmra.mxu0 %v1211
        %v1237 = vpop.f32.mrf.mxu0
        %v1238 = vadd.f32 0.0, %v1237
        %1239 = vdwg.mxu0
        %v1240 = vld [vmem:[%s6] sm:$0xff]
        %v1241 = vld [vmem:[%s6 + $0x8] sm:$0x3f]
        %vm1242 = vcmask 113664
        %v1244 = vsel %vm1242, %v1240, 0
        %v1247 = vsel %vm1242, %v1241, 0
        %vm1249 = vcmask 1045504
        %v1251 = vsel %vm1249, %v1238, 0
        %1253 = vmatpush.msra.mxu0 0.0
        %1254 = vmatpush.msra.mxu0 0.0
        %1255 = vmatpush.msra.mxu0 0.0
        %1256 = vmatpush.msra.mxu0 0.0
        %1257 = vmatpush.msra.mxu0 0.0
        %1258 = vmatpush.msra.mxu0 0.0
        %1259 = vmatpush.msra.mxu0 0.0
        %1260 = vmatpush.msra.mxu0 0.0
        %1261 = vmatpush.msra.mxu0 0.0
        %1262 = vmatpush.msra.mxu0 0.0
        %1263 = vmatpush.msra.mxu0 0.0
        %1264 = vmatpush.msra.mxu0 0.0
        %1265 = vmatpush.msra.mxu0 0.0
        %1266 = vmatpush.msra.mxu0 0.0
        %1267 = vmatpush.msra.mxu0 %v1251
        %1268 = vmatpush.msra.mxu0 %v1235
        %1269 = vmatmul.f32.gmra.mxu0 %v1244
        %v1270 = vpop.f32.mrf.mxu0
        %v1271 = vadd.f32 0.0, %v1270
        %1272 = vmatmul.f32.gmra.mxu0 %v1247
        %v1273 = vpop.f32.mrf.mxu0
        %v1274 = vadd.f32 0.0, %v1273
        %1275 = vdwg.mxu0
        %v1276 = vld [vmem:[#allocation7] sm:$0xff]
        %v1277 = vld [vmem:[#allocation7 + $0x8] sm:$0xff]
        %v1278 = vld [vmem:[#allocation7 + $0x10] sm:$0xff]
        %v1279 = vld [vmem:[#allocation7 + $0x18] sm:$0xff]
        %v1280 = vld [vmem:[#allocation7 + $0x20] sm:$0xff]
        %v1281 = vld [vmem:[#allocation7 + $0x28] sm:$0xff]
        %v1282 = vld [vmem:[#allocation7 + $0x30] sm:$0xff]
        %v1283 = vld [vmem:[#allocation7 + $0x38] sm:$0xff]
        %v1284 = vld [vmem:[#allocation7 + $0x40] sm:$0xff]
        %v1285 = vld [vmem:[#allocation7 + $0x48] sm:$0xff]
        %v1286 = vld [vmem:[#allocation7 + $0x50] sm:$0xff]
        %v1287 = vld [vmem:[#allocation7 + $0x58] sm:$0xff]
        %v1288 = vld [vmem:[#allocation7 + $0x60] sm:$0xff]
        %v1289 = vld [vmem:[#allocation7 + $0x68] sm:$0xff]
        %v1290 = vld [vmem:[#allocation7 + $0x70] sm:$0xff]
        %v1291 = vld [vmem:[#allocation7 + $0x78] sm:$0xff]
        %v1292 = vld [vmem:[#allocation7 + $0x80] sm:$0xff]
        %v1293 = vld [vmem:[#allocation7 + $0x88] sm:$0xff]
        %v1294 = vld [vmem:[#allocation7 + $0x90] sm:$0xff]
        %v1295 = vld [vmem:[#allocation7 + $0x98] sm:$0xff]
        %v1296 = vld [vmem:[#allocation7 + $0xa0] sm:$0xf]
        %v1297 = vld [vmem:[#allocation7 + $0xa8] sm:$0xf]
        %s1298 = scalar_lea.vmem %s6, 16
        %v1299 = vld [vmem:[%s1298] sm:$0xff]
        %v1300 = vld [vmem:[%s1298 + $0x8] sm:$0x3f]
        %v1302 = vsel %vm1242, %v1299, 0
        %v1305 = vsel %vm1242, %v1300, 0
        %1307 = vmatpush.msra.mxu0 0.0
        %1308 = vmatpush.msra.mxu0 0.0
        %1309 = vmatpush.msra.mxu0 0.0
        %1310 = vmatpush.msra.mxu0 0.0
        %1311 = vmatpush.msra.mxu0 0.0
        %1312 = vmatpush.msra.mxu0 0.0
        %1313 = vmatpush.msra.mxu0 0.0
        %1314 = vmatpush.msra.mxu0 0.0
        %1315 = vmatpush.msra.mxu0 0.0
        %1316 = vmatpush.msra.mxu0 0.0
        %1317 = vmatpush.msra.mxu0 0.0
        %1318 = vmatpush.msra.mxu0 0.0
        %1319 = vmatpush.msra.mxu0 0.0
        %1320 = vmatpush.msra.mxu0 0.0
        %1321 = vmatpush.msra.mxu0 %v1251
        %1322 = vmatpush.msra.mxu0 %v1235
        %1323 = vmatmul.f32.gmra.mxu0 %v1302
        %v1324 = vpop.f32.mrf.mxu0
        %v1325 = vadd.f32 0.0, %v1324
        %1326 = vmatmul.f32.gmra.mxu0 %v1305
        %v1327 = vpop.f32.mrf.mxu0
        %v1328 = vadd.f32 0.0, %v1327
        %1329 = vdwg.mxu0
        %s1330 = scalar_lea.vmem [#allocation7], 176
        %v1331 = vld [vmem:[%s1330] sm:$0xff]
        %v1332 = vld [vmem:[%s1330 + $0x8] sm:$0xff]
        %v1333 = vld [vmem:[%s1330 + $0x10] sm:$0xff]
        %v1334 = vld [vmem:[%s1330 + $0x18] sm:$0xff]
        %v1335 = vld [vmem:[%s1330 + $0x20] sm:$0xff]
        %v1336 = vld [vmem:[%s1330 + $0x28] sm:$0xff]
        %v1337 = vld [vmem:[%s1330 + $0x30] sm:$0xff]
        %v1338 = vld [vmem:[%s1330 + $0x38] sm:$0xff]
        %v1339 = vld [vmem:[%s1330 + $0x40] sm:$0xff]
        %v1340 = vld [vmem:[%s1330 + $0x48] sm:$0xff]
        %v1341 = vld [vmem:[%s1330 + $0x50] sm:$0xff]
        %v1342 = vld [vmem:[%s1330 + $0x58] sm:$0xff]
        %v1343 = vld [vmem:[%s1330 + $0x60] sm:$0xff]
        %v1344 = vld [vmem:[%s1330 + $0x68] sm:$0xff]
        %v1345 = vld [vmem:[%s1330 + $0x70] sm:$0xff]
        %v1346 = vld [vmem:[%s1330 + $0x78] sm:$0xff]
        %v1347 = vld [vmem:[%s1330 + $0x80] sm:$0xff]
        %v1348 = vld [vmem:[%s1330 + $0x88] sm:$0xff]
        %v1349 = vld [vmem:[%s1330 + $0x90] sm:$0xff]
        %v1350 = vld [vmem:[%s1330 + $0x98] sm:$0xff]
        %v1351 = vld [vmem:[%s1330 + $0xa0] sm:$0xf]
        %v1352 = vld [vmem:[%s1330 + $0xa8] sm:$0xf]
        %vm1353 = vcmask 687104
        %v1355 = vsel %vm1353, %v1325, 0
        %v1358 = vsel %vm1353, %v1328, 0
        %v1361 = vsel %vm634, %v1351, 0
        %v1364 = vsel %vm634, %v1352, 0
        %1366 = vmatpush.msra.mxu0 0.0
        %1367 = vmatpush.msra.mxu0 0.0
        %1368 = vmatpush.msra.mxu0 0.0
        %1369 = vmatpush.msra.mxu0 0.0
        %1370 = vmatpush.msra.mxu0 0.0
        %1371 = vmatpush.msra.mxu0 %v1361
        %1372 = vmatpush.msra.mxu0 %v1349
        %1373 = vmatpush.msra.mxu0 %v1347
        %1374 = vmatpush.msra.mxu0 %v1345
        %1375 = vmatpush.msra.mxu0 %v1343
        %1376 = vmatpush.msra.mxu0 %v1341
        %1377 = vmatpush.msra.mxu0 %v1339
        %1378 = vmatpush.msra.mxu0 %v1337
        %1379 = vmatpush.msra.mxu0 %v1335
        %1380 = vmatpush.msra.mxu0 %v1333
        %1381 = vmatpush.msra.mxu0 %v1331
        %1382 = vmatmul.f32.gmra.mxu0 %v1355
        %v1383 = vpop.f32.mrf.mxu0
        %v1384 = vadd.f32 0.0, %v1383
        %1385 = vmatmul.f32.gmra.mxu0 %v1358
        %v1386 = vpop.f32.mrf.mxu0
        %v1387 = vadd.f32 0.0, %v1386
        %1388 = vdwg.mxu0
        %1389 = vmatpush.msra.mxu0 0.0
        %1390 = vmatpush.msra.mxu0 0.0
        %1391 = vmatpush.msra.mxu0 0.0
        %1392 = vmatpush.msra.mxu0 0.0
        %1393 = vmatpush.msra.mxu0 0.0
        %1394 = vmatpush.msra.mxu0 %v1364
        %1395 = vmatpush.msra.mxu0 %v1350
        %1396 = vmatpush.msra.mxu0 %v1348
        %1397 = vmatpush.msra.mxu0 %v1346
        %1398 = vmatpush.msra.mxu0 %v1344
        %1399 = vmatpush.msra.mxu0 %v1342
        %1400 = vmatpush.msra.mxu0 %v1340
        %1401 = vmatpush.msra.mxu0 %v1338
        %1402 = vmatpush.msra.mxu0 %v1336
        %1403 = vmatpush.msra.mxu0 %v1334
        %1404 = vmatpush.msra.mxu0 %v1332
        %1405 = vmatmul.f32.gmra.mxu0 %v1355
        %v1406 = vpop.f32.mrf.mxu0
        %v1407 = vadd.f32 0.0, %v1406
        %1408 = vmatmul.f32.gmra.mxu0 %v1358
        %v1409 = vpop.f32.mrf.mxu0
        %v1410 = vadd.f32 0.0, %v1409
        %1411 = vdwg.mxu0
        %v1413 = vsel %vm1353, %v1271, 0
        %v1416 = vsel %vm1353, %v1274, 0
        %v1419 = vsel %vm634, %v1296, 0
        %v1422 = vsel %vm634, %v1297, 0
        %1424 = vmatpush.msra.mxu0 0.0
        %1425 = vmatpush.msra.mxu0 0.0
        %1426 = vmatpush.msra.mxu0 0.0
        %1427 = vmatpush.msra.mxu0 0.0
        %1428 = vmatpush.msra.mxu0 0.0
        %1429 = vmatpush.msra.mxu0 %v1419
        %1430 = vmatpush.msra.mxu0 %v1294
        %1431 = vmatpush.msra.mxu0 %v1292
        %1432 = vmatpush.msra.mxu0 %v1290
        %1433 = vmatpush.msra.mxu0 %v1288
        %1434 = vmatpush.msra.mxu0 %v1286
        %1435 = vmatpush.msra.mxu0 %v1284
        %1436 = vmatpush.msra.mxu0 %v1282
        %1437 = vmatpush.msra.mxu0 %v1280
        %1438 = vmatpush.msra.mxu0 %v1278
        %1439 = vmatpush.msra.mxu0 %v1276
        %1440 = vmatmul.f32.gmra.mxu0 %v1413
        %v1441 = vpop.f32.mrf.mxu0
        %v1442 = vadd.f32 %v1384, %v1441
        %1443 = vmatmul.f32.gmra.mxu0 %v1416
        %v1444 = vpop.f32.mrf.mxu0
        %v1445 = vadd.f32 %v1387, %v1444
        %1446 = vdwg.mxu0
        %1447 = vmatpush.msra.mxu0 0.0
        %1448 = vmatpush.msra.mxu0 0.0
        %1449 = vmatpush.msra.mxu0 0.0
        %1450 = vmatpush.msra.mxu0 0.0
        %1451 = vmatpush.msra.mxu0 0.0
        %1452 = vmatpush.msra.mxu0 %v1422
        %1453 = vmatpush.msra.mxu0 %v1295
        %1454 = vmatpush.msra.mxu0 %v1293
        %1455 = vmatpush.msra.mxu0 %v1291
        %1456 = vmatpush.msra.mxu0 %v1289
        %1457 = vmatpush.msra.mxu0 %v1287
        %1458 = vmatpush.msra.mxu0 %v1285
        %1459 = vmatpush.msra.mxu0 %v1283
        %1460 = vmatpush.msra.mxu0 %v1281
        %1461 = vmatpush.msra.mxu0 %v1279
        %1462 = vmatpush.msra.mxu0 %v1277
        %1463 = vmatmul.f32.gmra.mxu0 %v1413
        %v1464 = vpop.f32.mrf.mxu0
        %v1465 = vadd.f32 %v1407, %v1464
        %1466 = vmatmul.f32.gmra.mxu0 %v1416
        %v1467 = vpop.f32.mrf.mxu0
        %v1468 = vadd.f32 %v1410, %v1467
        %1469 = vdwg.mxu0
        %s1470 = scalar_lea.vmem %s6, 32
        %v1471 = vld [vmem:[%s1470] sm:$0xff]
        %v1472 = vld [vmem:[%s1470 + $0x8] sm:$0x3f]
        %v1474 = vsel %vm1242, %v1471, 0
        %v1477 = vsel %vm1242, %v1472, 0
        %1479 = vmatpush.msra.mxu0 0.0
        %1480 = vmatpush.msra.mxu0 0.0
        %1481 = vmatpush.msra.mxu0 0.0
        %1482 = vmatpush.msra.mxu0 0.0
        %1483 = vmatpush.msra.mxu0 0.0
        %1484 = vmatpush.msra.mxu0 0.0
        %1485 = vmatpush.msra.mxu0 0.0
        %1486 = vmatpush.msra.mxu0 0.0
        %1487 = vmatpush.msra.mxu0 0.0
        %1488 = vmatpush.msra.mxu0 0.0
        %1489 = vmatpush.msra.mxu0 0.0
        %1490 = vmatpush.msra.mxu0 0.0
        %1491 = vmatpush.msra.mxu0 0.0
        %1492 = vmatpush.msra.mxu0 0.0
        %1493 = vmatpush.msra.mxu0 %v1251
        %1494 = vmatpush.msra.mxu0 %v1235
        %1495 = vmatmul.f32.gmra.mxu0 %v1474
        %v1496 = vpop.f32.mrf.mxu0
        %v1497 = vadd.f32 0.0, %v1496
        %1498 = vmatmul.f32.gmra.mxu0 %v1477
        %v1499 = vpop.f32.mrf.mxu0
        %v1500 = vadd.f32 0.0, %v1499
        %1501 = vdwg.mxu0
        %s1502 = scalar_lea.vmem [#allocation7], 352
        %v1503 = vld [vmem:[%s1502] sm:$0xff]
        %v1504 = vld [vmem:[%s1502 + $0x8] sm:$0xff]
        %v1505 = vld [vmem:[%s1502 + $0x10] sm:$0xff]
        %v1506 = vld [vmem:[%s1502 + $0x18] sm:$0xff]
        %v1507 = vld [vmem:[%s1502 + $0x20] sm:$0xff]
        %v1508 = vld [vmem:[%s1502 + $0x28] sm:$0xff]
        %v1509 = vld [vmem:[%s1502 + $0x30] sm:$0xff]
        %v1510 = vld [vmem:[%s1502 + $0x38] sm:$0xff]
        %v1511 = vld [vmem:[%s1502 + $0x40] sm:$0xff]
        %v1512 = vld [vmem:[%s1502 + $0x48] sm:$0xff]
        %v1513 = vld [vmem:[%s1502 + $0x50] sm:$0xff]
        %v1514 = vld [vmem:[%s1502 + $0x58] sm:$0xff]
        %v1515 = vld [vmem:[%s1502 + $0x60] sm:$0xff]
        %v1516 = vld [vmem:[%s1502 + $0x68] sm:$0xff]
        %v1517 = vld [vmem:[%s1502 + $0x70] sm:$0xff]
        %v1518 = vld [vmem:[%s1502 + $0x78] sm:$0xff]
        %v1519 = vld [vmem:[%s1502 + $0x80] sm:$0xff]
        %v1520 = vld [vmem:[%s1502 + $0x88] sm:$0xff]
        %v1521 = vld [vmem:[%s1502 + $0x90] sm:$0xff]
        %v1522 = vld [vmem:[%s1502 + $0x98] sm:$0xff]
        %v1523 = vld [vmem:[%s1502 + $0xa0] sm:$0xf]
        %v1524 = vld [vmem:[%s1502 + $0xa8] sm:$0xf]
        %v1526 = vsel %vm1353, %v1497, 0
        %v1529 = vsel %vm1353, %v1500, 0
        %v1532 = vsel %vm634, %v1523, 0
        %v1535 = vsel %vm634, %v1524, 0
        %1537 = vmatpush.msra.mxu0 0.0
        %1538 = vmatpush.msra.mxu0 0.0
        %1539 = vmatpush.msra.mxu0 0.0
        %1540 = vmatpush.msra.mxu0 0.0
        %1541 = vmatpush.msra.mxu0 0.0
        %1542 = vmatpush.msra.mxu0 %v1532
        %1543 = vmatpush.msra.mxu0 %v1521
        %1544 = vmatpush.msra.mxu0 %v1519
        %1545 = vmatpush.msra.mxu0 %v1517
        %1546 = vmatpush.msra.mxu0 %v1515
        %1547 = vmatpush.msra.mxu0 %v1513
        %1548 = vmatpush.msra.mxu0 %v1511
        %1549 = vmatpush.msra.mxu0 %v1509
        %1550 = vmatpush.msra.mxu0 %v1507
        %1551 = vmatpush.msra.mxu0 %v1505
        %1552 = vmatpush.msra.mxu0 %v1503
        %1553 = vmatmul.f32.gmra.mxu0 %v1526
        %v1554 = vpop.f32.mrf.mxu0
        %v1555 = vadd.f32 0.0, %v1554
        %1556 = vmatmul.f32.gmra.mxu0 %v1529
        %v1557 = vpop.f32.mrf.mxu0
        %v1558 = vadd.f32 0.0, %v1557
        %1559 = vdwg.mxu0
        %1560 = vmatpush.msra.mxu0 0.0
        %1561 = vmatpush.msra.mxu0 0.0
        %1562 = vmatpush.msra.mxu0 0.0
        %1563 = vmatpush.msra.mxu0 0.0
        %1564 = vmatpush.msra.mxu0 0.0
        %1565 = vmatpush.msra.mxu0 %v1535
        %1566 = vmatpush.msra.mxu0 %v1522
        %1567 = vmatpush.msra.mxu0 %v1520
        %1568 = vmatpush.msra.mxu0 %v1518
        %1569 = vmatpush.msra.mxu0 %v1516
        %1570 = vmatpush.msra.mxu0 %v1514
        %1571 = vmatpush.msra.mxu0 %v1512
        %1572 = vmatpush.msra.mxu0 %v1510
        %1573 = vmatpush.msra.mxu0 %v1508
        %1574 = vmatpush.msra.mxu0 %v1506
        %1575 = vmatpush.msra.mxu0 %v1504
        %1576 = vmatmul.f32.gmra.mxu0 %v1526
        %v1577 = vpop.f32.mrf.mxu0
        %v1578 = vadd.f32 0.0, %v1577
        %1579 = vmatmul.f32.gmra.mxu0 %v1529
        %v1580 = vpop.f32.mrf.mxu0
        %v1581 = vadd.f32 0.0, %v1580
        %1582 = vdwg.mxu0
        %v1583 = vadd.f32 %v1442, %v1555
        %v1584 = vadd.f32 %v1465, %v1578
        %v1585 = vadd.f32 %v1445, %v1558
        %v1586 = vadd.f32 %v1468, %v1581
        %v1587 = vld [vmem:[%s8] sm:$0x3]
        %v1589 = vperm.slane %v1587, 0
        %v1590 = vperm.slane %v1587, 1
        %v1593 = vadd.f32 %v1583, %v1589
        %v1594 = vadd.f32 %v1584, %v1590
        %v1595 = vadd.f32 %v1585, %v1589
        %v1596 = vadd.f32 %v1586, %v1590
        %v1597 = vmax.f32 %v1593, 0.0
        %v1598 = vmax.f32 %v1594, 0.0
        %v1599 = vmax.f32 %v1595, 0.0
        %v1600 = vmax.f32 %v1596, 0.0
        %1605 = vrot.lane.b32.xlu0 %v1597, 112
        %v1606 = vpop.permute.xlu0 %1605
        %1607 = vrot.lane.b32.xlu0 %v1598, 112
        %v1608 = vpop.permute.xlu0 %1607
        %1609 = vrot.lane.b32.xlu0 %v1599, 112
        %v1610 = vpop.permute.xlu0 %1609
        %1611 = vrot.lane.b32.xlu0 %v1600, 112
        %v1612 = vpop.permute.xlu0 %1611
        %vm1613 = vcmask 916480
        %v1614 = vsel %vm1613, %v1606, %v1608
        %v1615 = vsel %vm1613, %v1610, %v1612
        %v1620 = vmax.f32 %v1597, %v1614
        %v1621 = vmax.f32 %v1598, %v1608
        %v1622 = vmax.f32 %v1599, %v1615
        %v1623 = vmax.f32 %v1600, %v1612
        %v1624 = vld [vmem:[%s9] sm:$0xff]
        %v1625 = vld [vmem:[%s9 + $0x8] sm:$0xff]
        %v1626 = vld [vmem:[%s9 + $0x10] sm:$0xff]
        %v1627 = vld [vmem:[%s9 + $0x18] sm:$0xff]
        %v1628 = vld [vmem:[%s9 + $0x20] sm:$0xff]
        %v1629 = vld [vmem:[%s9 + $0x28] sm:$0xff]
        %v1630 = vld [vmem:[%s9 + $0x30] sm:$0xff]
        %v1631 = vld [vmem:[%s9 + $0x38] sm:$0xff]
        %v1632 = vld [vmem:[%s9 + $0x40] sm:$0xff]
        %v1633 = vld [vmem:[%s9 + $0x48] sm:$0xff]
        %v1634 = vld [vmem:[%s9 + $0x50] sm:$0xff]
        %v1635 = vld [vmem:[%s9 + $0x58] sm:$0xff]
        %v1636 = vld [vmem:[%s9 + $0x60] sm:$0xff]
        %v1637 = vld [vmem:[%s9 + $0x68] sm:$0xff]
        %v1638 = vld [vmem:[%s9 + $0x70] sm:$0xff]
        %v1639 = vld [vmem:[%s9 + $0x78] sm:$0xff]
        %v1640 = vld [vmem:[%s9 + $0x80] sm:$0xff]
        %v1641 = vld [vmem:[%s9 + $0x88] sm:$0xff]
        %v1642 = vld [vmem:[%s9 + $0x90] sm:$0xff]
        %v1643 = vld [vmem:[%s9 + $0x98] sm:$0xff]
        %v1644 = vld [vmem:[%s9 + $0xa0] sm:$0xff]
        %v1645 = vld [vmem:[%s9 + $0xa8] sm:$0xff]
        %v1646 = vld [vmem:[%s9 + $0xb0] sm:$0xff]
        %v1647 = vld [vmem:[%s9 + $0xb8] sm:$0xff]
        %v1648 = vld [vmem:[%s9 + $0xc0] sm:$0xff]
        %v1649 = vld [vmem:[%s9 + $0xc8] sm:$0xff]
        %vm1650 = vcmask 654336
        %v1652 = vsel %vm1650, %v1621, 0
        %v1655 = vsel %vm1650, %v1623, 0
        %1657 = vmatpush.msra.mxu0 %v1639
        %1658 = vmatpush.msra.mxu0 %v1638
        %1659 = vmatpush.msra.mxu0 %v1637
        %1660 = vmatpush.msra.mxu0 %v1636
        %1661 = vmatpush.msra.mxu0 %v1635
        %1662 = vmatpush.msra.mxu0 %v1634
        %1663 = vmatpush.msra.mxu0 %v1633
        %1664 = vmatpush.msra.mxu0 %v1632
        %1665 = vmatpush.msra.mxu0 %v1631
        %1666 = vmatpush.msra.mxu0 %v1630
        %1667 = vmatpush.msra.mxu0 %v1629
        %1668 = vmatpush.msra.mxu0 %v1628
        %1669 = vmatpush.msra.mxu0 %v1627
        %1670 = vmatpush.msra.mxu0 %v1626
        %1671 = vmatpush.msra.mxu0 %v1625
        %1672 = vmatpush.msra.mxu0 %v1624
        %1673 = vmatmul.f32.gmra.mxu0 %v1620
        %v1674 = vpop.f32.mrf.mxu0
        %v1675 = vadd.f32 0.0, %v1674
        %1676 = vmatmul.f32.gmra.mxu0 %v1622
        %v1677 = vpop.f32.mrf.mxu0
        %v1678 = vadd.f32 0.0, %v1677
        %1679 = vdwg.mxu0
        %1680 = vmatpush.msra.mxu0 0.0
        %1681 = vmatpush.msra.mxu0 0.0
        %1682 = vmatpush.msra.mxu0 0.0
        %1683 = vmatpush.msra.mxu0 0.0
        %1684 = vmatpush.msra.mxu0 0.0
        %1685 = vmatpush.msra.mxu0 0.0
        %1686 = vmatpush.msra.mxu0 %v1649
        %1687 = vmatpush.msra.mxu0 %v1648
        %1688 = vmatpush.msra.mxu0 %v1647
        %1689 = vmatpush.msra.mxu0 %v1646
        %1690 = vmatpush.msra.mxu0 %v1645
        %1691 = vmatpush.msra.mxu0 %v1644
        %1692 = vmatpush.msra.mxu0 %v1643
        %1693 = vmatpush.msra.mxu0 %v1642
        %1694 = vmatpush.msra.mxu0 %v1641
        %1695 = vmatpush.msra.mxu0 %v1640
        %1696 = vmatmul.f32.gmra.mxu0 %v1652
        %v1697 = vpop.f32.mrf.mxu0
        %v1698 = vadd.f32 %v1675, %v1697
        %1699 = vmatmul.f32.gmra.mxu0 %v1655
        %v1700 = vpop.f32.mrf.mxu0
        %v1701 = vadd.f32 %v1678, %v1700
        %1702 = vdwg.mxu0
        %v1705 = vrot.slane %v1698, 1
        %v1706 = vrot.slane %v1701, 1
        %v1707 = vsel %vm1188, %v1705, %v1706
        %v1710 = vmax.f32 %v1698, %v1707
        %v1711 = vmax.f32 %v1701, %v1706
        %v1712 = vld [vmem:[%s10] sm:$0x7f]
        %vm1713 = vcmask 105472
        %v1715 = vsel %vm1713, %v1712, 0
        %vm1717 = vcmask 1044480
        %v1719 = vsel %vm1717, %v1711, 0
        %1721 = vmatpush.msra.mxu0 0.0
        %1722 = vmatpush.msra.mxu0 0.0
        %1723 = vmatpush.msra.mxu0 0.0
        %1724 = vmatpush.msra.mxu0 0.0
        %1725 = vmatpush.msra.mxu0 0.0
        %1726 = vmatpush.msra.mxu0 0.0
        %1727 = vmatpush.msra.mxu0 0.0
        %1728 = vmatpush.msra.mxu0 0.0
        %1729 = vmatpush.msra.mxu0 0.0
        %1730 = vmatpush.msra.mxu0 0.0
        %1731 = vmatpush.msra.mxu0 0.0
        %1732 = vmatpush.msra.mxu0 0.0
        %1733 = vmatpush.msra.mxu0 0.0
        %1734 = vmatpush.msra.mxu0 0.0
        %1735 = vmatpush.msra.mxu0 %v1719
        %1736 = vmatpush.msra.mxu0 %v1710
        %1737 = vmatmul.f32.gmra.mxu0 %v1715
        %v1738 = vpop.f32.mrf.mxu0
        %v1739 = vadd.f32 0.0, %v1738
        %1740 = vdwg.mxu0
        %v1741 = vld [vmem:[%s12] sm:$0x1]
        %v1742 = vld [vmem:[#allocation8] sm:$0xff]
        %v1743 = vld [vmem:[#allocation8 + $0x8] sm:$0xff]
        %v1744 = vld [vmem:[#allocation8 + $0x10] sm:$0xff]
        %v1745 = vld [vmem:[#allocation8 + $0x18] sm:$0xff]
        %v1746 = vld [vmem:[#allocation8 + $0x20] sm:$0xff]
        %v1747 = vld [vmem:[#allocation8 + $0x28] sm:$0xff]
        %v1748 = vld [vmem:[#allocation8 + $0x30] sm:$0xff]
        %v1749 = vld [vmem:[#allocation8 + $0x38] sm:$0xff]
        %v1750 = vld [vmem:[#allocation8 + $0x40] sm:$0xff]
        %v1751 = vld [vmem:[#allocation8 + $0x48] sm:$0xff]
        %v1752 = vld [vmem:[#allocation8 + $0x50] sm:$0xff]
        %v1753 = vld [vmem:[#allocation8 + $0x58] sm:$0xff]
        %v1754 = vld [vmem:[#allocation8 + $0x60] sm:$0xff]
        %v1755 = vld [vmem:[#allocation8 + $0x68] sm:$0xff]
        %v1757 = vsel %vm1613, %v1739, 0
        %1759 = vmatpush.msra.mxu0 0.0
        %1760 = vmatpush.msra.mxu0 0.0
        %1761 = vmatpush.msra.mxu0 %v1755
        %1762 = vmatpush.msra.mxu0 %v1754
        %1763 = vmatpush.msra.mxu0 %v1753
        %1764 = vmatpush.msra.mxu0 %v1752
        %1765 = vmatpush.msra.mxu0 %v1751
        %1766 = vmatpush.msra.mxu0 %v1750
        %1767 = vmatpush.msra.mxu0 %v1749
        %1768 = vmatpush.msra.mxu0 %v1748
        %1769 = vmatpush.msra.mxu0 %v1747
        %1770 = vmatpush.msra.mxu0 %v1746
        %1771 = vmatpush.msra.mxu0 %v1745
        %1772 = vmatpush.msra.mxu0 %v1744
        %1773 = vmatpush.msra.mxu0 %v1743
        %1774 = vmatpush.msra.mxu0 %v1742
        %1775 = vmatmul.f32.gmra.mxu0 %v1757
        %v1776 = vpop.f32.mrf.mxu0
        %v1777 = vadd.f32 0.0, %v1776
        %1778 = vdwg.mxu0
        %v1779 = vadd.f32 %v1741, %v1777
        %s1780 = scalar_lea.vmem [#allocation8], 112
        %v1781 = vld [vmem:[%s1780] sm:$0xff]
        %v1782 = vld [vmem:[%s1780 + $0x8] sm:$0xff]
        %v1783 = vld [vmem:[%s1780 + $0x10] sm:$0xff]
        %v1784 = vld [vmem:[%s1780 + $0x18] sm:$0xff]
        %v1785 = vld [vmem:[%s1780 + $0x20] sm:$0xff]
        %v1786 = vld [vmem:[%s1780 + $0x28] sm:$0xff]
        %v1787 = vld [vmem:[%s1780 + $0x30] sm:$0xff]
        %v1788 = vld [vmem:[%s1780 + $0x38] sm:$0xff]
        %v1789 = vld [vmem:[%s1780 + $0x40] sm:$0xff]
        %v1790 = vld [vmem:[%s1780 + $0x48] sm:$0xff]
        %v1791 = vld [vmem:[%s1780 + $0x50] sm:$0xff]
        %v1792 = vld [vmem:[%s1780 + $0x58] sm:$0xff]
        %v1793 = vld [vmem:[%s1780 + $0x60] sm:$0xff]
        %v1794 = vld [vmem:[%s1780 + $0x68] sm:$0xff]
        %v1795 = vrot.slane %v1739, 1
        %v1796 = vsel %vm1613, %v1795, 0
        %1798 = vmatpush.msra.mxu0 0.0
        %1799 = vmatpush.msra.mxu0 0.0
        %1800 = vmatpush.msra.mxu0 %v1794
        %1801 = vmatpush.msra.mxu0 %v1793
        %1802 = vmatpush.msra.mxu0 %v1792
        %1803 = vmatpush.msra.mxu0 %v1791
        %1804 = vmatpush.msra.mxu0 %v1790
        %1805 = vmatpush.msra.mxu0 %v1789
        %1806 = vmatpush.msra.mxu0 %v1788
        %1807 = vmatpush.msra.mxu0 %v1787
        %1808 = vmatpush.msra.mxu0 %v1786
        %1809 = vmatpush.msra.mxu0 %v1785
        %1810 = vmatpush.msra.mxu0 %v1784
        %1811 = vmatpush.msra.mxu0 %v1783
        %1812 = vmatpush.msra.mxu0 %v1782
        %1813 = vmatpush.msra.mxu0 %v1781
        %1814 = vmatmul.f32.gmra.mxu0 %v1796
        %v1815 = vpop.f32.mrf.mxu0
        %v1816 = vadd.f32 0.0, %v1815
        %1817 = vdwg.mxu0
        %v1818 = vadd.f32 %v1779, %v1816
        %s1819 = scalar_lea.vmem [#allocation8], 224
        %v1820 = vld [vmem:[%s1819] sm:$0xff]
        %v1821 = vld [vmem:[%s1819 + $0x8] sm:$0xff]
        %v1822 = vld [vmem:[%s1819 + $0x10] sm:$0xff]
        %v1823 = vld [vmem:[%s1819 + $0x18] sm:$0xff]
        %v1824 = vld [vmem:[%s1819 + $0x20] sm:$0xff]
        %v1825 = vld [vmem:[%s1819 + $0x28] sm:$0xff]
        %v1826 = vld [vmem:[%s1819 + $0x30] sm:$0xff]
        %v1827 = vld [vmem:[%s1819 + $0x38] sm:$0xff]
        %v1828 = vld [vmem:[%s1819 + $0x40] sm:$0xff]
        %v1829 = vld [vmem:[%s1819 + $0x48] sm:$0xff]
        %v1830 = vld [vmem:[%s1819 + $0x50] sm:$0xff]
        %v1831 = vld [vmem:[%s1819 + $0x58] sm:$0xff]
        %v1832 = vld [vmem:[%s1819 + $0x60] sm:$0xff]
        %v1833 = vld [vmem:[%s1819 + $0x68] sm:$0xff]
        %v1834 = vrot.slane %v1739, 2
        %v1835 = vsel %vm1613, %v1834, 0
        %1837 = vmatpush.msra.mxu0 0.0
        %1838 = vmatpush.msra.mxu0 0.0
        %1839 = vmatpush.msra.mxu0 %v1833
        %1840 = vmatpush.msra.mxu0 %v1832
        %1841 = vmatpush.msra.mxu0 %v1831
        %1842 = vmatpush.msra.mxu0 %v1830
        %1843 = vmatpush.msra.mxu0 %v1829
        %1844 = vmatpush.msra.mxu0 %v1828
        %1845 = vmatpush.msra.mxu0 %v1827
        %1846 = vmatpush.msra.mxu0 %v1826
        %1847 = vmatpush.msra.mxu0 %v1825
        %1848 = vmatpush.msra.mxu0 %v1824
        %1849 = vmatpush.msra.mxu0 %v1823
        %1850 = vmatpush.msra.mxu0 %v1822
        %1851 = vmatpush.msra.mxu0 %v1821
        %1852 = vmatpush.msra.mxu0 %v1820
        %1853 = vmatmul.f32.gmra.mxu0 %v1835
        %v1854 = vpop.f32.mrf.mxu0
        %v1855 = vadd.f32 0.0, %v1854
        %1856 = vdwg.mxu0
        %v1857 = vadd.f32 %v1818, %v1855
        %s1858 = scalar_lea.vmem [#allocation8], 336
        %v1859 = vld [vmem:[%s1858] sm:$0xff]
        %v1860 = vld [vmem:[%s1858 + $0x8] sm:$0xff]
        %v1861 = vld [vmem:[%s1858 + $0x10] sm:$0xff]
        %v1862 = vld [vmem:[%s1858 + $0x18] sm:$0xff]
        %v1863 = vld [vmem:[%s1858 + $0x20] sm:$0xff]
        %v1864 = vld [vmem:[%s1858 + $0x28] sm:$0xff]
        %v1865 = vld [vmem:[%s1858 + $0x30] sm:$0xff]
        %v1866 = vld [vmem:[%s1858 + $0x38] sm:$0xff]
        %v1867 = vld [vmem:[%s1858 + $0x40] sm:$0xff]
        %v1868 = vld [vmem:[%s1858 + $0x48] sm:$0xff]
        %v1869 = vld [vmem:[%s1858 + $0x50] sm:$0xff]
        %v1870 = vld [vmem:[%s1858 + $0x58] sm:$0xff]
        %v1871 = vld [vmem:[%s1858 + $0x60] sm:$0xff]
        %v1872 = vld [vmem:[%s1858 + $0x68] sm:$0xff]
        %v1873 = vrot.slane %v1739, 3
        %v1874 = vsel %vm1613, %v1873, 0
        %1876 = vmatpush.msra.mxu0 0.0
        %1877 = vmatpush.msra.mxu0 0.0
        %1878 = vmatpush.msra.mxu0 %v1872
        %1879 = vmatpush.msra.mxu0 %v1871
        %1880 = vmatpush.msra.mxu0 %v1870
        %1881 = vmatpush.msra.mxu0 %v1869
        %1882 = vmatpush.msra.mxu0 %v1868
        %1883 = vmatpush.msra.mxu0 %v1867
        %1884 = vmatpush.msra.mxu0 %v1866
        %1885 = vmatpush.msra.mxu0 %v1865
        %1886 = vmatpush.msra.mxu0 %v1864
        %1887 = vmatpush.msra.mxu0 %v1863
        %1888 = vmatpush.msra.mxu0 %v1862
        %1889 = vmatpush.msra.mxu0 %v1861
        %1890 = vmatpush.msra.mxu0 %v1860
        %1891 = vmatpush.msra.mxu0 %v1859
        %1892 = vmatmul.f32.gmra.mxu0 %v1874
        %v1893 = vpop.f32.mrf.mxu0
        %v1894 = vadd.f32 0.0, %v1893
        %1895 = vdwg.mxu0
        %v1896 = vadd.f32 %v1857, %v1894
        %s1897 = scalar_lea.vmem [#allocation8], 448
        %v1898 = vld [vmem:[%s1897] sm:$0xff]
        %v1899 = vld [vmem:[%s1897 + $0x8] sm:$0xff]
        %v1900 = vld [vmem:[%s1897 + $0x10] sm:$0xff]
        %v1901 = vld [vmem:[%s1897 + $0x18] sm:$0xff]
        %v1902 = vld [vmem:[%s1897 + $0x20] sm:$0xff]
        %v1903 = vld [vmem:[%s1897 + $0x28] sm:$0xff]
        %v1904 = vld [vmem:[%s1897 + $0x30] sm:$0xff]
        %v1905 = vld [vmem:[%s1897 + $0x38] sm:$0xff]
        %v1906 = vld [vmem:[%s1897 + $0x40] sm:$0xff]
        %v1907 = vld [vmem:[%s1897 + $0x48] sm:$0xff]
        %v1908 = vld [vmem:[%s1897 + $0x50] sm:$0xff]
        %v1909 = vld [vmem:[%s1897 + $0x58] sm:$0xff]
        %v1910 = vld [vmem:[%s1897 + $0x60] sm:$0xff]
        %v1911 = vld [vmem:[%s1897 + $0x68] sm:$0xff]
        %v1912 = vrot.slane %v1739, 4
        %v1913 = vsel %vm1613, %v1912, 0
        %1915 = vmatpush.msra.mxu0 0.0
        %1916 = vmatpush.msra.mxu0 0.0
        %1917 = vmatpush.msra.mxu0 %v1911
        %1918 = vmatpush.msra.mxu0 %v1910
        %1919 = vmatpush.msra.mxu0 %v1909
        %1920 = vmatpush.msra.mxu0 %v1908
        %1921 = vmatpush.msra.mxu0 %v1907
        %1922 = vmatpush.msra.mxu0 %v1906
        %1923 = vmatpush.msra.mxu0 %v1905
        %1924 = vmatpush.msra.mxu0 %v1904
        %1925 = vmatpush.msra.mxu0 %v1903
        %1926 = vmatpush.msra.mxu0 %v1902
        %1927 = vmatpush.msra.mxu0 %v1901
        %1928 = vmatpush.msra.mxu0 %v1900
        %1929 = vmatpush.msra.mxu0 %v1899
        %1930 = vmatpush.msra.mxu0 %v1898
        %1931 = vmatmul.f32.gmra.mxu0 %v1913
        %v1932 = vpop.f32.mrf.mxu0
        %v1933 = vadd.f32 0.0, %v1932
        %1934 = vdwg.mxu0
        %v1935 = vadd.f32 %v1896, %v1933
        %s1936 = scalar_lea.vmem [#allocation8], 560
        %v1937 = vld [vmem:[%s1936] sm:$0xff]
        %v1938 = vld [vmem:[%s1936 + $0x8] sm:$0xff]
        %v1939 = vld [vmem:[%s1936 + $0x10] sm:$0xff]
        %v1940 = vld [vmem:[%s1936 + $0x18] sm:$0xff]
        %v1941 = vld [vmem:[%s1936 + $0x20] sm:$0xff]
        %v1942 = vld [vmem:[%s1936 + $0x28] sm:$0xff]
        %v1943 = vld [vmem:[%s1936 + $0x30] sm:$0xff]
        %v1944 = vld [vmem:[%s1936 + $0x38] sm:$0xff]
        %v1945 = vld [vmem:[%s1936 + $0x40] sm:$0xff]
        %v1946 = vld [vmem:[%s1936 + $0x48] sm:$0xff]
        %v1947 = vld [vmem:[%s1936 + $0x50] sm:$0xff]
        %v1948 = vld [vmem:[%s1936 + $0x58] sm:$0xff]
        %v1949 = vld [vmem:[%s1936 + $0x60] sm:$0xff]
        %v1950 = vld [vmem:[%s1936 + $0x68] sm:$0xff]
        %v1951 = vrot.slane %v1739, 5
        %v1952 = vsel %vm1613, %v1951, 0
        %1954 = vmatpush.msra.mxu0 0.0
        %1955 = vmatpush.msra.mxu0 0.0
        %1956 = vmatpush.msra.mxu0 %v1950
        %1957 = vmatpush.msra.mxu0 %v1949
        %1958 = vmatpush.msra.mxu0 %v1948
        %1959 = vmatpush.msra.mxu0 %v1947
        %1960 = vmatpush.msra.mxu0 %v1946
        %1961 = vmatpush.msra.mxu0 %v1945
        %1962 = vmatpush.msra.mxu0 %v1944
        %1963 = vmatpush.msra.mxu0 %v1943
        %1964 = vmatpush.msra.mxu0 %v1942
        %1965 = vmatpush.msra.mxu0 %v1941
        %1966 = vmatpush.msra.mxu0 %v1940
        %1967 = vmatpush.msra.mxu0 %v1939
        %1968 = vmatpush.msra.mxu0 %v1938
        %1969 = vmatpush.msra.mxu0 %v1937
        %1970 = vmatmul.f32.gmra.mxu0 %v1952
        %v1971 = vpop.f32.mrf.mxu0
        %v1972 = vadd.f32 0.0, %v1971
        %1973 = vdwg.mxu0
        %v1974 = vadd.f32 %v1935, %v1972
        %s1975 = scalar_lea.vmem [#allocation8], 672
        %v1976 = vld [vmem:[%s1975] sm:$0xff]
        %v1977 = vld [vmem:[%s1975 + $0x8] sm:$0xff]
        %v1978 = vld [vmem:[%s1975 + $0x10] sm:$0xff]
        %v1979 = vld [vmem:[%s1975 + $0x18] sm:$0xff]
        %v1980 = vld [vmem:[%s1975 + $0x20] sm:$0xff]
        %v1981 = vld [vmem:[%s1975 + $0x28] sm:$0xff]
        %v1982 = vld [vmem:[%s1975 + $0x30] sm:$0xff]
        %v1983 = vld [vmem:[%s1975 + $0x38] sm:$0xff]
        %v1984 = vld [vmem:[%s1975 + $0x40] sm:$0xff]
        %v1985 = vld [vmem:[%s1975 + $0x48] sm:$0xff]
        %v1986 = vld [vmem:[%s1975 + $0x50] sm:$0xff]
        %v1987 = vld [vmem:[%s1975 + $0x58] sm:$0xff]
        %v1988 = vld [vmem:[%s1975 + $0x60] sm:$0xff]
        %v1989 = vld [vmem:[%s1975 + $0x68] sm:$0xff]
        %v1990 = vrot.slane %v1739, 6
        %v1991 = vsel %vm1613, %v1990, 0
        %1993 = vmatpush.msra.mxu0 0.0
        %1994 = vmatpush.msra.mxu0 0.0
        %1995 = vmatpush.msra.mxu0 %v1989
        %1996 = vmatpush.msra.mxu0 %v1988
        %1997 = vmatpush.msra.mxu0 %v1987
        %1998 = vmatpush.msra.mxu0 %v1986
        %1999 = vmatpush.msra.mxu0 %v1985
        %2000 = vmatpush.msra.mxu0 %v1984
        %2001 = vmatpush.msra.mxu0 %v1983
        %2002 = vmatpush.msra.mxu0 %v1982
        %2003 = vmatpush.msra.mxu0 %v1981
        %2004 = vmatpush.msra.mxu0 %v1980
        %2005 = vmatpush.msra.mxu0 %v1979
        %2006 = vmatpush.msra.mxu0 %v1978
        %2007 = vmatpush.msra.mxu0 %v1977
        %2008 = vmatpush.msra.mxu0 %v1976
        %2009 = vmatmul.f32.gmra.mxu0 %v1991
        %v2010 = vpop.f32.mrf.mxu0
        %v2011 = vadd.f32 0.0, %v2010
        %2012 = vdwg.mxu0
        %v2013 = vadd.f32 %v1974, %v2011
        %v2014 = vld [vmem:[%s13] sm:$0xff]
        %v2015 = vld [vmem:[%s13 + $0x8] sm:$0xff]
        %v2016 = vld [vmem:[%s13 + $0x10] sm:$0xff]
        %v2017 = vld [vmem:[%s13 + $0x18] sm:$0xff]
        %v2018 = vld [vmem:[%s13 + $0x20] sm:$0xff]
        %v2019 = vld [vmem:[%s13 + $0x28] sm:$0xff]
        %v2020 = vld [vmem:[%s13 + $0x30] sm:$0xff]
        %v2021 = vld [vmem:[%s13 + $0x38] sm:$0xff]
        %v2022 = vld [vmem:[%s13 + $0x40] sm:$0xff]
        %v2023 = vld [vmem:[%s13 + $0x48] sm:$0xff]
        %v2024 = vld [vmem:[%s13 + $0x50] sm:$0xff]
        %v2025 = vld [vmem:[%s13 + $0x58] sm:$0xff]
        %v2026 = vld [vmem:[%s13 + $0x60] sm:$0xff]
        %v2027 = vld [vmem:[%s13 + $0x68] sm:$0xff]
        %v2028 = vld [vmem:[%s13 + $0x70] sm:$0xff]
        %v2029 = vld [vmem:[%s14] sm:$0x1]
        %vm2030 = vcmask 982016
        %v2032 = vsel %vm2030, %v2013, 0
        %2034 = vmatpush.msra.mxu0 0.0
        %2035 = vmatpush.msra.mxu0 %v2028
        %2036 = vmatpush.msra.mxu0 %v2027
        %2037 = vmatpush.msra.mxu0 %v2026
        %2038 = vmatpush.msra.mxu0 %v2025
        %2039 = vmatpush.msra.mxu0 %v2024
        %2040 = vmatpush.msra.mxu0 %v2023
        %2041 = vmatpush.msra.mxu0 %v2022
        %2042 = vmatpush.msra.mxu0 %v2021
        %2043 = vmatpush.msra.mxu0 %v2020
        %2044 = vmatpush.msra.mxu0 %v2019
        %2045 = vmatpush.msra.mxu0 %v2018
        %2046 = vmatpush.msra.mxu0 %v2017
        %2047 = vmatpush.msra.mxu0 %v2016
        %2048 = vmatpush.msra.mxu0 %v2015
        %2049 = vmatpush.msra.mxu0 %v2014
        %2050 = vmatmul.f32.gmra.mxu0 %v2032
        %v2051 = vpop.f32.mrf.mxu0
        %v2052 = vadd.f32 %v2029, %v2051
        %2053 = vdwg.mxu0
        %v2054 = vld [vmem:[%s15] sm:$0xff]
        %v2055 = vld [vmem:[%s15 + $0x8] sm:$0xff]
        %v2056 = vld [vmem:[%s15 + $0x10] sm:$0xff]
        %v2057 = vld [vmem:[%s15 + $0x18] sm:$0xff]
        %v2058 = vld [vmem:[%s15 + $0x20] sm:$0xff]
        %v2059 = vld [vmem:[%s15 + $0x28] sm:$0xff]
        %v2060 = vld [vmem:[%s15 + $0x30] sm:$0xff]
        %v2061 = vld [vmem:[%s15 + $0x38] sm:$0xff]
        %v2062 = vld [vmem:[%s15 + $0x40] sm:$0xff]
        %v2063 = vld [vmem:[%s15 + $0x48] sm:$0xff]
        %v2064 = vld [vmem:[%s15 + $0x50] sm:$0xf]
        %v2065 = vld [vmem:[%s16] sm:$0x1]
        %v2067 = vsel %vm1353, %v2052, 0
        %v2070 = vsel %vm634, %v2064, 0
        %2072 = vmatpush.msra.mxu0 0.0
        %2073 = vmatpush.msra.mxu0 0.0
        %2074 = vmatpush.msra.mxu0 0.0
        %2075 = vmatpush.msra.mxu0 0.0
        %2076 = vmatpush.msra.mxu0 0.0
        %2077 = vmatpush.msra.mxu0 %v2070
        %2078 = vmatpush.msra.mxu0 %v2063
        %2079 = vmatpush.msra.mxu0 %v2062
        %2080 = vmatpush.msra.mxu0 %v2061
        %2081 = vmatpush.msra.mxu0 %v2060
        %2082 = vmatpush.msra.mxu0 %v2059
        %2083 = vmatpush.msra.mxu0 %v2058
        %2084 = vmatpush.msra.mxu0 %v2057
        %2085 = vmatpush.msra.mxu0 %v2056
        %2086 = vmatpush.msra.mxu0 %v2055
        %2087 = vmatpush.msra.mxu0 %v2054
        %2088 = vmatmul.f32.gmra.mxu0 %v2067
        %v2089 = vpop.f32.mrf.mxu0
        %v2090 = vadd.f32 %v2065, %v2089
        %2091 = vdwg.mxu0
        %vm2092 = vcmask 73728
        %2093 = vst.msk [vmem:[%s607] sm:$0x1] %vm2092, %v2090
        %s2094 = sand.u32 %s404, 1
        %s2095 = scalar_lea.sflag [#allocation4], %s2094
        %s2096 = sand.u32 %s404, 1
        %s2097 = scalar_lea.vmem [#allocation10], %s2096
        // Predicated region
        $region105: #{forward.1} parent=87 // pred_check
          %p2098 = pneg %p414
        $region106: #{forward.1} parent=87 // pred_check_branch
          %2100 = sbr.rel (%p2098) target = $region108
        $region107: #{forward.1} parent=87 // pred_region
          %2102 = vsyncadd %s2095, 0
          %s2103 = scalar_lea.hbm %s17, %s34
          %s2105 = sshll.u32 %s2097, 4
          %s2106 = int_to_ptr.vmem [resolvable:$true] %s2105
          %s2107 = sshll.u32 %s2103, 4
          %s2108 = int_to_ptr.hbm [resolvable:$true] %s2107
          %2110 = dma.vmem_to_hbm [thread:$0]  %s2106, 16, %s2108, %s2095
        $region108: #{forward.1} parent=87 // pred_fallthru
          _
      $region88: #{forward.1} parent=5 // pred_fallthru
        _
      %p2111 = scmp.le.s32.totalorder 2, %s29
      // Predicated region
      $region109: #{forward.1} parent=5 // pred_check
        %p2112 = pneg %p2111
      $region110: #{forward.1} parent=5 // pred_check_branch
        %2114 = sbr.rel (%p2112) target = $region112
      $region111: #{forward.1} parent=5 // pred_region
        %s2115 = ssub.s32 %s29, 2
        // Predicated region
        $region113: #{forward.1} parent=111 // pred_check
          %p2116 = pneg %p420
        $region114: #{forward.1} parent=111 // pred_check_branch
          %2118 = sbr.rel (%p2116) target = $region116
        $region115: #{forward.1} parent=111 // pred_region
          %s2119 = sand.u32 %s405, 1
          %s2120 = scalar_lea.sflag [#allocation4], %s2119
          %s2121 = sand.u32 %s405, 1
          %s2122 = scalar_lea.vmem [#allocation10], %s2121
          %2124 = dma.done %s2120, 16
        $region116: #{forward.1} parent=111 // pred_fallthru
          _
      $region112: #{forward.1} parent=5 // pred_fallthru
        _
    $region6: #{forward.1} parent=1 // loop_footer
      %s33 = sadd.s32 1, %s29
    $region7: #{forward.1} parent=1 // loop_footer_branch
      %28 = sbr.rel target = $region3
    $region8: #{forward.1} parent=1 // loop_exit
      _
    %2125 = vsyncpa [#allocation3], 1
    %s2126 = scalar_lea.sflag [#allocation3], 1
    %2127 = vsyncpa %s2126, 1
    %2128 = vsyncpa [#allocation6], 1
    %2129 = vsyncpa [#allocation9], 1
    %2130 = vsyncpa [#allocation4], 1
    %s2131 = scalar_lea.sflag [#allocation4], 1
    %2132 = vsyncpa %s2131, 1

</llo_original>
